<compile_context>
chip_gen: v7x
topology: tpu7x:2x2x1
jax: 0.10.0
libtpu: 0.0.40
codegen_flags: <defaults>
</compile_context>

<pallas_src>
import jax
import jax.numpy as jnp
import numpy as np
from jax.experimental import pallas as pl
from jax.experimental.pallas import tpu as pltpu

VMEM_LIMIT = 48 * 1024 * 1024          # safe on v5e/v6e (128 MiB) and v7x (64 MiB)


def _round_up(x, m):
    return ((x + m - 1) // m) * m


def _pick_bn(n, target):
    """Largest lane-dense tile (multiple of 128) dividing n, else full n."""
    for cand in (target, 256, 128):
        if n >= cand and n % cand == 0:
            return cand
    return n


def _pick_bm(m, target):
    return target if m >= target else _round_up(m, 8)


# ----------------------------------------------------------------------------
# 1. RMSNorm  (normalizes each batch element by its Frobenius norm over (S, D))
# ----------------------------------------------------------------------------
def _rmsnorm_kernel(x_ref, scale_ref, o_ref):
    x = x_ref[...].astype(jnp.float32)                     # (S, D)
    numel = x.shape[0] * x.shape[1]
    ff_rms = jnp.sqrt(jnp.sum(x * x)) * (numel ** -0.5)
    o_ref[...] = (scale_ref[...] * (x / ff_rms)).astype(o_ref.dtype)


def rmsnorm(x, scale):
    B, S, D = x.shape
    return pl.pallas_call(
        _rmsnorm_kernel,
        out_shape=jax.ShapeDtypeStruct((B, S, D), jnp.float32),
        grid_spec=pltpu.PrefetchScalarGridSpec(
            num_scalar_prefetch=0,
            grid=(B,),
            in_specs=[
                pl.BlockSpec((None, S, D), lambda b: (b, 0, 0)),
                pl.BlockSpec((S, D), lambda b: (0, 0)),
            ],
            out_specs=pl.BlockSpec((None, S, D), lambda b: (b, 0, 0)),
        ),
        compiler_params=pltpu.CompilerParams(
            dimension_semantics=("parallel",),
            vmem_limit_bytes=VMEM_LIMIT),
        cost_estimate=pl.CostEstimate(
            flops=int(3 * B * S * D), transcendentals=0,
            bytes_accessed=int(4 * (2 * B * S * D + S * D))),
    )(x, scale)


# ----------------------------------------------------------------------------
# 2. Tiled Linear: out = x @ W + b   (bf16 weights, f32 accumulation)
# ----------------------------------------------------------------------------
def _linear_kernel(x_ref, w_ref, b_ref, o_ref):
    x = x_ref[...].astype(w_ref.dtype)                     # bf16 cast for MXU
    acc = jnp.dot(x, w_ref[...], preferred_element_type=jnp.float32)
    o_ref[...] = (acc + b_ref[...]).astype(o_ref.dtype)


def linear(x2d, w, b, *, block_m=256, block_n=512):
    M, K = x2d.shape
    Kw, N = w.shape
    assert K == Kw
    bm = _pick_bm(M, block_m)
    m_pad = _round_up(M, bm)
    if m_pad != M:
        x2d = jnp.pad(x2d, ((0, m_pad - M), (0, 0)))
    bn = _pick_bn(N, block_n)
    grid = (m_pad // bm, N // bn)
    out = pl.pallas_call(
        _linear_kernel,
        out_shape=jax.ShapeDtypeStruct((m_pad, N), jnp.float32),
        grid_spec=pltpu.PrefetchScalarGridSpec(
            num_scalar_prefetch=0,
            grid=grid,
            in_specs=[
                pl.BlockSpec((bm, K), lambda i, j: (i, 0)),    # x row tile
                pl.BlockSpec((K, bn), lambda i, j: (0, j)),    # weight N-tile
                pl.BlockSpec((1, bn), lambda i, j: (0, j)),    # bias N-tile
            ],
            out_specs=pl.BlockSpec((bm, bn), lambda i, j: (i, j)),
        ),
        compiler_params=pltpu.CompilerParams(
            dimension_semantics=("parallel", "parallel"),
            vmem_limit_bytes=VMEM_LIMIT),
        cost_estimate=pl.CostEstimate(
            flops=int(2 * m_pad * K * N), transcendentals=0,
            bytes_accessed=int(4 * (m_pad * K + m_pad * N + N)
                               + K * N * w.dtype.itemsize)),
    )(x2d, w, b)
    return out[:M]


# ----------------------------------------------------------------------------
# 3. RoPE + causal softmax attention (one grid step per batch*head)
# ----------------------------------------------------------------------------
def _rope_attn_kernel(q_ref, k_ref, v_ref, cos_ref, sin_ref, swap_ref, o_ref):
    q = q_ref[...]                                         # (S, D) f32
    k = k_ref[...]
    v = v_ref[...]
    cos = cos_ref[...]
    sin = sin_ref[...]
    P = swap_ref[...]                                      # even/odd pair-swap matrix
    # q @ R[pos] expressed exactly as elementwise cos/sin + pair swap.
    q_rot = q * cos + jnp.dot(q, P, preferred_element_type=jnp.float32) * sin
    k_rot = k * cos + jnp.dot(k, P, preferred_element_type=jnp.float32) * sin
    d = q.shape[-1]
    s = jax.lax.dot_general(q_rot, k_rot, (((1,), (1,)), ((), ())),
                            preferred_element_type=jnp.float32) * (1.0 / (d ** 0.5))
    n = q.shape[0]
    row = jax.lax.broadcasted_iota(jnp.int32, (n, n), 0)
    col = jax.lax.broadcasted_iota(jnp.int32, (n, n), 1)
    s = jnp.where(col <= row, s, -1e30)                    # causal mask
    m = jnp.max(s, axis=-1, keepdims=True)
    p = jnp.exp(s - m)
    p = p / jnp.sum(p, axis=-1, keepdims=True)
    # TODO(synk): sdpa dropout_p=0.1 omitted (eval/inference mode).
    o_ref[...] = jnp.dot(p, v, preferred_element_type=jnp.float32).astype(o_ref.dtype)


def rope_attention(q, k, v, cos, sin_sgn, swap):
    BH, S, D = q.shape
    return pl.pallas_call(
        _rope_attn_kernel,
        out_shape=jax.ShapeDtypeStruct((BH, S, D), jnp.float32),
        grid_spec=pltpu.PrefetchScalarGridSpec(
            num_scalar_prefetch=0,
            grid=(BH,),
            in_specs=[
                pl.BlockSpec((None, S, D), lambda b: (b, 0, 0)),
                pl.BlockSpec((None, S, D), lambda b: (b, 0, 0)),
                pl.BlockSpec((None, S, D), lambda b: (b, 0, 0)),
                pl.BlockSpec((S, D), lambda b: (0, 0)),
                pl.BlockSpec((S, D), lambda b: (0, 0)),
                pl.BlockSpec((D, D), lambda b: (0, 0)),
            ],
            out_specs=pl.BlockSpec((None, S, D), lambda b: (b, 0, 0)),
        ),
        compiler_params=pltpu.CompilerParams(
            dimension_semantics=("parallel",),
            vmem_limit_bytes=VMEM_LIMIT),
        cost_estimate=pl.CostEstimate(
            flops=int(BH * (4 * S * D * D + 4 * S * S * D)),
            transcendentals=int(BH * S * S),
            bytes_accessed=int(4 * (4 * BH * S * D + 2 * S * D + D * D))),
    )(q, k, v, cos, sin_sgn, swap)


# ----------------------------------------------------------------------------
# 4. SwiGLU: one fused [Wg | Wl] dot per N-tile + in-kernel swish gating
# ----------------------------------------------------------------------------
def _swiglu_kernel(beta_ref, x_ref, wf_ref, bf_ref, o_ref):
    bn = o_ref.shape[-1]
    x = x_ref[...].astype(wf_ref.dtype)                    # bf16 cast for MXU
    y = jnp.dot(x, wf_ref[...], preferred_element_type=jnp.float32) + bf_ref[...]
    gate = y[:, :bn]
    lin_p = y[:, bn:]
    beta = beta_ref[0]
    swish = gate * jax.nn.sigmoid(beta * gate)             # f32 on VPU/EUP
    o_ref[...] = (swish * lin_p).astype(o_ref.dtype)


def swiglu(x2d, w_fused, b_fused, beta, d_out, *, block_m=256):
    M, K = x2d.shape
    nb, Kw, two_bn = w_fused.shape
    bn = two_bn // 2
    assert Kw == K and nb * bn == d_out
    bm = _pick_bm(M, block_m)
    m_pad = _round_up(M, bm)
    if m_pad != M:
        x2d = jnp.pad(x2d, ((0, m_pad - M), (0, 0)))
    grid = (m_pad // bm, nb)
    out = pl.pallas_call(
        _swiglu_kernel,
        out_shape=jax.ShapeDtypeStruct((m_pad, d_out), jnp.float32),
        grid_spec=pltpu.PrefetchScalarGridSpec(
            num_scalar_prefetch=0,
            grid=grid,
            in_specs=[
                pl.BlockSpec(memory_space=pltpu.MemorySpace.SMEM),        # beta
                pl.BlockSpec((bm, K), lambda i, j: (i, 0)),               # x tile
                pl.BlockSpec((None, K, 2 * bn), lambda i, j: (j, 0, 0)),  # [Wg|Wl] tile
                pl.BlockSpec((None, 1, 2 * bn), lambda i, j: (j, 0, 0)),  # [bg|bl] tile
            ],
            out_specs=pl.BlockSpec((bm, bn), lambda i, j: (i, j)),
        ),
        compiler_params=pltpu.CompilerParams(
            dimension_semantics=("parallel", "parallel"),
            vmem_limit_bytes=VMEM_LIMIT),
        cost_estimate=pl.CostEstimate(
            flops=int(4 * m_pad * K * d_out + 4 * m_pad * d_out),
            transcendentals=int(m_pad * d_out),
            bytes_accessed=int(4 * (m_pad * K + m_pad * d_out + 2 * d_out)
                               + int(w_fused.size) * w_fused.dtype.itemsize)),
    )(beta, x2d, w_fused, b_fused)
    return out[:M]


# ----------------------------------------------------------------------------
# Parameter construction / preparation
# ----------------------------------------------------------------------------
def init_params(key, context_window, d_model, n_heads):
    """Deterministic init mimicking nn.Linear uniform(+/-1/sqrt(fan_in))."""
    keys = jax.random.split(key, 12)
    D, H = d_model, n_heads

    def uni(k, fan_in, shape):
        bound = 1.0 / np.sqrt(fan_in)
        return jax.random.uniform(k, shape, jnp.float32, -bound, bound)

    return dict(
        scale=jnp.ones((context_window, D), jnp.float32),
        wq=uni(keys[0], D, (H, D, D)),            # per-head, stored (d_in, d_out)
        wk=uni(keys[1], D, (H, D, D)),
        wv=uni(keys[2], D, (H, D, D)),
        wo=uni(keys[3], H * D, (H * D, D)),
        bo=uni(keys[4], H * D, (1, D)),
        w_ff=uni(keys[5], D, (D, D)),
        b_ff=uni(keys[6], D, (1, D)),
        wg=uni(keys[7], D, (D, D)),
        bg=uni(keys[8], D, (1, D)),
        wl=uni(keys[9], D, (D, D)),
        bl=uni(keys[10], D, (1, D)),
        beta=jnp.ones((1,), jnp.float32),
    )


def rope_tables(context_window, d_model):
    """cos / signed-sin tables + pair-swap matrix (kernel) and full R (reference)."""
    S, D = context_window, d_model
    half = D // 2
    idx = np.arange(half)
    theta = 10000.0 ** (-2.0 * (idx - 1.0) / D)            # matches the PyTorch spec
    ang = np.arange(S, dtype=np.float64)[:, None] * theta[None, :]
    cos, sin = np.cos(ang), np.sin(ang)
    cos_full = np.repeat(cos, 2, axis=1)                   # (S, D)
    sin_sgn = np.zeros((S, D))
    sin_sgn[:, 0::2] = sin
    sin_sgn[:, 1::2] = -sin
    P = np.zeros((D, D))
    P[2 * idx + 1, 2 * idx] = 1.0
    P[2 * idx, 2 * idx + 1] = 1.0
    R = np.zeros((S, D, D))
    R[:, 2 * idx, 2 * idx] = cos
    R[:, 2 * idx, 2 * idx + 1] = -sin
    R[:, 2 * idx + 1, 2 * idx] = sin
    R[:, 2 * idx + 1, 2 * idx + 1] = cos
    return (jnp.asarray(cos_full, jnp.float32), jnp.asarray(sin_sgn, jnp.float32),
            jnp.asarray(P, jnp.float32), jnp.asarray(R, jnp.float32))


def prepare_params(raw, n_heads, d_model):
    """Fuse weights and cast them to bf16 once (stored bf16 in HBM)."""
    D, H = d_model, n_heads
    bf16 = jnp.bfloat16
    w_qkv = jnp.concatenate(
        [raw['wq'].transpose(1, 0, 2).reshape(D, H * D),
         raw['wk'].transpose(1, 0, 2).reshape(D, H * D),
         raw['wv'].transpose(1, 0, 2).reshape(D, H * D)], axis=1).astype(bf16)
    b_qkv = jnp.zeros((1, 3 * H * D), jnp.float32)         # q/k/v have no bias
    bn = _pick_bn(D, 512)
    nb = D // bn
    wg_b = raw['wg'].astype(bf16).reshape(D, nb, bn).transpose(1, 0, 2)
    wl_b = raw['wl'].astype(bf16).reshape(D, nb, bn).transpose(1, 0, 2)
    w_swiglu = jnp.concatenate([wg_b, wl_b], axis=-1)      # (nb, D, 2*bn)
    b_swiglu = jnp.concatenate([raw['bg'].reshape(nb, 1, bn),
                                raw['bl'].reshape(nb, 1, bn)], axis=-1)
    return dict(scale=raw['scale'],
                w_qkv=w_qkv, b_qkv=b_qkv,
                w_o=raw['wo'].astype(bf16), b_o=raw['bo'],
                w_ff=raw['w_ff'].astype(bf16), b_ff=raw['b_ff'],
                w_swiglu=w_swiglu, b_swiglu=b_swiglu, beta=raw['beta'])


# ----------------------------------------------------------------------------
# Full LlamaBlock forward (eval mode)
# ----------------------------------------------------------------------------
def llama_block(x, pp, *, n_heads):
    B, S, D = x.shape
    H = n_heads
    scale = pp['scale'][:S]

    h1 = rmsnorm(x, scale)
    qkv = linear(h1.reshape(B * S, D), pp['w_qkv'], pp['b_qkv'])   # (B*S, 3*H*D)
    qkv = qkv.reshape(B, S, 3, H, D)
    q = qkv[:, :, 0].transpose(0, 2, 1, 3).reshape(B * H, S, D)
    k = qkv[:, :, 1].transpose(0, 2, 1, 3).reshape(B * H, S, D)
    v = qkv[:, :, 2].transpose(0, 2, 1, 3).reshape(B * H, S, D)
    attn = rope_attention(q, k, v, pp['cos'][:S], pp['sin'][:S], pp['swap'])
    cat = attn.reshape(B, H, S, D).transpose(0, 2, 1, 3).reshape(B * S, H * D)
    proj = linear(cat, pp['w_o'], pp['b_o']).reshape(B, S, D)
    # TODO(synk): nn.Dropout(0.1) after the projection omitted (eval mode).
    h2 = h1 + proj

    h3 = rmsnorm(h2, scale)
    ff1 = linear(h3.reshape(B * S, D), pp['w_ff'], pp['b_ff'])
    ff2 = swiglu(ff1, pp['w_swiglu'], pp['b_swiglu'], pp['beta'], D).reshape(B, S, D)
    return h3 + ff2


# ----------------------------------------------------------------------------
# Pure-JAX reference (mimics the kernels' bf16-operand / f32-accum matmuls)
# ----------------------------------------------------------------------------
def ref_llama_block(x, raw, R, n_heads):
    B, S, D = x.shape
    H = n_heads
    scale = raw['scale'][:S]
    Rm = R[:S]

    def rms(t):
        ff = jnp.sqrt(jnp.sum(t * t, axis=(1, 2))) * ((S * D) ** -0.5)
        return scale[None] * (t / ff[:, None, None])

    def lin(t2d, w, b):
        return jnp.dot(t2d.astype(jnp.bfloat16), w.astype(jnp.bfloat16),
                       preferred_element_type=jnp.float32) + b

    h1 = rms(x)
    h1_2d = h1.reshape(B * S, D)
    heads = []
    for h in range(H):
        q = lin(h1_2d, raw['wq'][h], 0.0).reshape(B, S, D)
        k = lin(h1_2d, raw['wk'][h], 0.0).reshape(B, S, D)
        v = lin(h1_2d, raw['wv'][h], 0.0).reshape(B, S, D)
        q_rot = jnp.einsum('bsd,sde->bse', q, Rm)
        k_rot = jnp.einsum('bsd,sde->bse', k, Rm)
        s = jnp.einsum('bqd,bkd->bqk', q_rot, k_rot) / (D ** 0.5)
        mask = jnp.tril(jnp.ones((S, S), dtype=bool))
        s = jnp.where(mask[None], s, -1e30)
        p = jax.nn.softmax(s, axis=-1)
        heads.append(jnp.einsum('bqk,bkd->bqd', p, v))
    cat = jnp.concatenate(heads, axis=-1)
    proj = lin(cat.reshape(B * S, H * D), raw['wo'], raw['bo']).reshape(B, S, D)
    h2 = h1 + proj
    h3 = rms(h2)
    ff1 = lin(h3.reshape(B * S, D), raw['w_ff'], raw['b_ff'])
    gate = lin(ff1, raw['wg'], raw['bg'])
    lin_p = lin(ff1, raw['wl'], raw['bl'])
    sw = gate * jax.nn.sigmoid(raw['beta'][0] * gate)
    return h3 + (sw * lin_p).reshape(B, S, D)


if __name__ == "__main__":
    key = jax.random.PRNGKey(0)
    B, S, D, H = 2, 16, 32, 2          # batch=2, seq=context_window=16, d_model=32, heads=2
    kx, kp = jax.random.split(key)
    x = jax.random.normal(kx, (B, S, D), jnp.float32)

    raw = init_params(kp, S, D, H)
    cos, sin_sgn, swap, R = rope_tables(S, D)
    pp = prepare_params(raw, H, D)
    pp.update(cos=cos, sin=sin_sgn, swap=swap)

    fwd = jax.jit(lambda xx, prms: llama_block(xx, prms, n_heads=H))
    out = fwd(x, pp)
    jax.block_until_ready(out)

    ref = ref_llama_block(x, raw, R, H)
    assert out.shape == (B, S, D)
    assert jnp.allclose(out, ref, atol=1e-2, rtol=1e-2), \
        f"max abs err {float(jnp.max(jnp.abs(out - ref)))}"

    print("KERNEL_OK")
</pallas_src>

<mosaic_0001>
module attributes {stable_mosaic.version = 11 : i64} {
  func.func @_rmsnorm_kernel(%arg0: i32, %arg1: memref<1x16x32xf32, #tpu.memory_space<vmem>>, %arg2: memref<16x32xf32, #tpu.memory_space<vmem>>, %arg3: memref<1x16x32xf32, #tpu.memory_space<vmem>>) attributes {dimension_semantics = [#tpu.dimension_semantics<parallel>], iteration_bounds = array<i64: 2>, scalar_prefetch = 0 : i64, scratch_operands = 0 : i64, tpu.core_type = #tpu.core_type<tc>, window_params = [{transform_indices = @transform_0, window_bounds = array<i64: 1, 16, 32>}, {pipeline_mode = #tpu.pipeline_mode<synchronous>, transform_indices = @transform_1, window_bounds = array<i64: 16, 32>}, {transform_indices = @transform_2, window_bounds = array<i64: 1, 16, 32>}]} {
    %c0 = arith.constant 0 : index
    %c0_0 = arith.constant 0 : index
    %c0_1 = arith.constant 0 : index
    %0 = vector.load %arg1[%c0, %c0_0, %c0_1] : memref<1x16x32xf32, #tpu.memory_space<vmem>>, vector<1x16x32xf32>
    %1 = vector.shape_cast %0 : vector<1x16x32xf32> to vector<16x32xf32>
    %2 = arith.mulf %1, %1 : vector<16x32xf32>
    %3 = vector.shape_cast %2 : vector<16x32xf32> to vector<1x16x32xf32>
    %cst = arith.constant dense<0.000000e+00> : vector<1xf32>
    %4 = vector.multi_reduction <add>, %3, %cst [1, 2] : vector<1x16x32xf32> to vector<1xf32>
    %5 = vector.shape_cast %4 : vector<1xf32> to vector<1x1x1xf32>
    %6 = vector.extract %5[0, 0, 0] : f32 from vector<1x1x1xf32>
    %7 = math.sqrt %6 : f32
    %cst_2 = arith.constant 0.0441941731 : f32
    %8 = arith.mulf %7, %cst_2 : f32
    %c0_3 = arith.constant 0 : index
    %c0_4 = arith.constant 0 : index
    %9 = vector.load %arg2[%c0_3, %c0_4] : memref<16x32xf32, #tpu.memory_space<vmem>>, vector<16x32xf32>
    %10 = vector.broadcast %8 : f32 to vector<16x32xf32>
    %11 = arith.divf %1, %10 : vector<16x32xf32>
    %12 = arith.mulf %9, %11 : vector<16x32xf32>
    %c0_5 = arith.constant 0 : index
    %c0_6 = arith.constant 0 : index
    %c0_7 = arith.constant 0 : index
    %13 = vector.load %arg3[%c0_5, %c0_6, %c0_7] : memref<1x16x32xf32, #tpu.memory_space<vmem>>, vector<1x16x32xf32>
    %14 = vector.shape_cast %13 : vector<1x16x32xf32> to vector<16x32xf32>
    %15 = vector.shape_cast %12 : vector<16x32xf32> to vector<1x16x32xf32>
    tpu.vector_store %arg3[%c0_5, %c0_6, %c0_7], %15 {strides = array<i32>} : memref<1x16x32xf32, #tpu.memory_space<vmem>>, vector<1x16x32xf32>,
    return
  }
  func.func @transform_0(%arg0: i32) -> (i32, i32, i32) {
    %c0_i32 = arith.constant 0 : i32
    %c0_i32_0 = arith.constant 0 : i32
    %c0_i32_1 = arith.constant 0 : i32
    return %arg0, %c0_i32, %c0_i32_0 : i32, i32, i32
  }
  func.func @transform_1(%arg0: i32) -> (i32, i32) {
    %c0_i32 = arith.constant 0 : i32
    %c0_i32_0 = arith.constant 0 : i32
    %c0_i32_1 = arith.constant 0 : i32
    return %c0_i32, %c0_i32_0 : i32, i32
  }
  func.func @transform_2(%arg0: i32) -> (i32, i32, i32) {
    %c0_i32 = arith.constant 0 : i32
    %c0_i32_0 = arith.constant 0 : i32
    %c0_i32_1 = arith.constant 0 : i32
    return %arg0, %c0_i32, %c0_i32_0 : i32, i32, i32
  }
}

module attributes {stable_mosaic.version = 11 : i64} {
  func.func @_linear_kernel(%arg0: i32, %arg1: i32, %arg2: memref<32x32xf32, #tpu.memory_space<vmem>>, %arg3: memref<32x192xbf16, #tpu.memory_space<vmem>>, %arg4: memref<1x192xf32, #tpu.memory_space<vmem>>, %arg5: memref<32x192xf32, #tpu.memory_space<vmem>>) attributes {dimension_semantics = [#tpu.dimension_semantics<parallel>, #tpu.dimension_semantics<parallel>], iteration_bounds = array<i64: 1, 1>, scalar_prefetch = 0 : i64, scratch_operands = 0 : i64, tpu.core_type = #tpu.core_type<tc>, window_params = [{transform_indices = @transform_0, window_bounds = array<i64: 32, 32>}, {transform_indices = @transform_1, window_bounds = array<i64: 32, 192>}, {transform_indices = @transform_2, window_bounds = array<i64: 1, 192>}, {transform_indices = @transform_3, window_bounds = array<i64: 32, 192>}]} {
    %c0 = arith.constant 0 : index
    %c0_0 = arith.constant 0 : index
    %0 = vector.load %arg2[%c0, %c0_0] : memref<32x32xf32, #tpu.memory_space<vmem>>, vector<32x32xf32>
    %1 = arith.truncf %0 : vector<32x32xf32> to vector<32x32xbf16>
    %c0_1 = arith.constant 0 : index
    %c0_2 = arith.constant 0 : index
    %2 = vector.load %arg3[%c0_1, %c0_2] : memref<32x192xbf16, #tpu.memory_space<vmem>>, vector<32x192xbf16>
    %cst = arith.constant dense<0.000000e+00> : vector<32x192xf32>
    %3 = tpu.matmul %1, %2, %cst {dimension_numbers = #tpu.dot_dimension_numbers<[1], [0], [0], [1], [0, 0, 1, 1], [], []>} : vector<32x32xbf16>, vector<32x192xbf16>, vector<32x192xf32> -> vector<32x192xf32>
    %c0_3 = arith.constant 0 : index
    %c0_4 = arith.constant 0 : index
    %4 = vector.load %arg4[%c0_3, %c0_4] : memref<1x192xf32, #tpu.memory_space<vmem>>, vector<1x192xf32>
    %5 = vector.broadcast %4 : vector<1x192xf32> to vector<32x192xf32>
    %6 = arith.addf %3, %5 : vector<32x192xf32>
    %c0_5 = arith.constant 0 : index
    %c0_6 = arith.constant 0 : index
    %7 = vector.load %arg5[%c0_5, %c0_6] : memref<32x192xf32, #tpu.memory_space<vmem>>, vector<32x192xf32>
    tpu.vector_store %arg5[%c0_5, %c0_6], %6 {strides = array<i32>} : memref<32x192xf32, #tpu.memory_space<vmem>>, vector<32x192xf32>,
    return
  }
  func.func @transform_0(%arg0: i32, %arg1: i32) -> (i32, i32) {
    %c0_i32 = arith.constant 0 : i32
    %c0_i32_0 = arith.constant 0 : i32
    return %arg0, %c0_i32 : i32, i32
  }
  func.func @transform_1(%arg0: i32, %arg1: i32) -> (i32, i32) {
    %c0_i32 = arith.constant 0 : i32
    %c0_i32_0 = arith.constant 0 : i32
    return %c0_i32, %arg1 : i32, i32
  }
  func.func @transform_2(%arg0: i32, %arg1: i32) -> (i32, i32) {
    %c0_i32 = arith.constant 0 : i32
    %c0_i32_0 = arith.constant 0 : i32
    return %c0_i32, %arg1 : i32, i32
  }
  func.func @transform_3(%arg0: i32, %arg1: i32) -> (i32, i32) {
    %c0_i32 = arith.constant 0 : i32
    return %arg0, %arg1 : i32, i32
  }
}

module attributes {stable_mosaic.version = 11 : i64} {
  func.func @_rope_attn_kernel(%arg0: i32, %arg1: memref<1x16x32xf32, #tpu.memory_space<vmem>>, %arg2: memref<1x16x32xf32, #tpu.memory_space<vmem>>, %arg3: memref<1x16x32xf32, #tpu.memory_space<vmem>>, %arg4: memref<16x32xf32, #tpu.memory_space<vmem>>, %arg5: memref<16x32xf32, #tpu.memory_space<vmem>>, %arg6: memref<32x32xf32, #tpu.memory_space<vmem>>, %arg7: memref<1x16x32xf32, #tpu.memory_space<vmem>>) attributes {dimension_semantics = [#tpu.dimension_semantics<parallel>], iteration_bounds = array<i64: 4>, scalar_prefetch = 0 : i64, scratch_operands = 0 : i64, tpu.core_type = #tpu.core_type<tc>, window_params = [{transform_indices = @transform_0, window_bounds = array<i64: 1, 16, 32>}, {transform_indices = @transform_1, window_bounds = array<i64: 1, 16, 32>}, {transform_indices = @transform_2, window_bounds = array<i64: 1, 16, 32>}, {pipeline_mode = #tpu.pipeline_mode<synchronous>, transform_indices = @transform_3, window_bounds = array<i64: 16, 32>}, {pipeline_mode = #tpu.pipeline_mode<synchronous>, transform_indices = @transform_4, window_bounds = array<i64: 16, 32>}, {pipeline_mode = #tpu.pipeline_mode<synchronous>, transform_indices = @transform_5, window_bounds = array<i64: 32, 32>}, {transform_indices = @transform_6, window_bounds = array<i64: 1, 16, 32>}]} {
    %c0 = arith.constant 0 : index
    %c0_0 = arith.constant 0 : index
    %c0_1 = arith.constant 0 : index
    %0 = vector.load %arg1[%c0, %c0_0, %c0_1] : memref<1x16x32xf32, #tpu.memory_space<vmem>>, vector<1x16x32xf32>
    %1 = vector.shape_cast %0 : vector<1x16x32xf32> to vector<16x32xf32>
    %c0_2 = arith.constant 0 : index
    %c0_3 = arith.constant 0 : index
    %c0_4 = arith.constant 0 : index
    %2 = vector.load %arg2[%c0_2, %c0_3, %c0_4] : memref<1x16x32xf32, #tpu.memory_space<vmem>>, vector<1x16x32xf32>
    %3 = vector.shape_cast %2 : vector<1x16x32xf32> to vector<16x32xf32>
    %c0_5 = arith.constant 0 : index
    %c0_6 = arith.constant 0 : index
    %c0_7 = arith.constant 0 : index
    %4 = vector.load %arg3[%c0_5, %c0_6, %c0_7] : memref<1x16x32xf32, #tpu.memory_space<vmem>>, vector<1x16x32xf32>
    %5 = vector.shape_cast %4 : vector<1x16x32xf32> to vector<16x32xf32>
    %c0_8 = arith.constant 0 : index
    %c0_9 = arith.constant 0 : index
    %6 = vector.load %arg4[%c0_8, %c0_9] : memref<16x32xf32, #tpu.memory_space<vmem>>, vector<16x32xf32>
    %c0_10 = arith.constant 0 : index
    %c0_11 = arith.constant 0 : index
    %7 = vector.load %arg5[%c0_10, %c0_11] : memref<16x32xf32, #tpu.memory_space<vmem>>, vector<16x32xf32>
    %c0_12 = arith.constant 0 : index
    %c0_13 = arith.constant 0 : index
    %8 = vector.load %arg6[%c0_12, %c0_13] : memref<32x32xf32, #tpu.memory_space<vmem>>, vector<32x32xf32>
    %9 = arith.mulf %1, %6 : vector<16x32xf32>
    %cst = arith.constant dense<0.000000e+00> : vector<16x32xf32>
    %10 = tpu.matmul %1, %8, %cst {dimension_numbers = #tpu.dot_dimension_numbers<[1], [0], [0], [1], [0, 0, 1, 1], [], []>} : vector<16x32xf32>, vector<32x32xf32>, vector<16x32xf32> -> vector<16x32xf32>
    %11 = arith.mulf %10, %7 : vector<16x32xf32>
    %12 = arith.addf %9, %11 : vector<16x32xf32>
    %13 = arith.mulf %3, %6 : vector<16x32xf32>
    %cst_14 = arith.constant dense<0.000000e+00> : vector<16x32xf32>
    %14 = tpu.matmul %3, %8, %cst_14 {dimension_numbers = #tpu.dot_dimension_numbers<[1], [0], [0], [1], [0, 0, 1, 1], [], []>} : vector<16x32xf32>, vector<32x32xf32>, vector<16x32xf32> -> vector<16x32xf32>
    %15 = arith.mulf %14, %7 : vector<16x32xf32>
    %16 = arith.addf %13, %15 : vector<16x32xf32>
    %cst_15 = arith.constant dense<0.000000e+00> : vector<16x16xf32>
    %17 = tpu.matmul %12, %16, %cst_15 {dimension_numbers = #tpu.dot_dimension_numbers<[1], [1], [0], [0], [0, 0, 1, 0], [], []>} : vector<16x32xf32>, vector<16x32xf32>, vector<16x16xf32> -> vector<16x16xf32>
    %cst_16 = arith.constant 0.176776692 : f32
    %18 = vector.broadcast %cst_16 : f32 to vector<16x16xf32>
    %19 = arith.mulf %17, %18 : vector<16x16xf32>
    %20 = tpu.iota {dimensions = array<i32: 0>} : vector<16x16xi32>
    %21 = tpu.iota {dimensions = array<i32: 1>} : vector<16x16xi32>
    %22 = arith.cmpi sle, %21, %20 : vector<16x16xi32>
    %cst_17 = arith.constant -1.000000e+30 : f32
    %23 = vector.broadcast %cst_17 : f32 to vector<16x16xf32>
    %24 = arith.select %22, %19, %23 : vector<16x16xi1>, vector<16x16xf32>
    %cst_18 = arith.constant dense<0xFF800000> : vector<16xf32>
    %25 = vector.multi_reduction <maximumf>, %24, %cst_18 [1] : vector<16x16xf32> to vector<16xf32>
    %26 = vector.shape_cast %25 : vector<16xf32> to vector<16x1xf32>
    %27 = vector.broadcast %26 : vector<16x1xf32> to vector<16x16xf32>
    %28 = arith.subf %24, %27 : vector<16x16xf32>
    %29 = math.exp %28 : vector<16x16xf32>
    %cst_19 = arith.constant dense<0.000000e+00> : vector<16xf32>
    %30 = vector.multi_reduction <add>, %29, %cst_19 [1] : vector<16x16xf32> to vector<16xf32>
    %31 = vector.shape_cast %30 : vector<16xf32> to vector<16x1xf32>
    %32 = vector.broadcast %31 : vector<16x1xf32> to vector<16x16xf32>
    %33 = arith.divf %29, %32 : vector<16x16xf32>
    %cst_20 = arith.constant dense<0.000000e+00> : vector<16x32xf32>
    %34 = tpu.matmul %33, %5, %cst_20 {dimension_numbers = #tpu.dot_dimension_numbers<[1], [0], [0], [1], [0, 0, 1, 1], [], []>} : vector<16x16xf32>, vector<16x32xf32>, vector<16x32xf32> -> vector<16x32xf32>
    %c0_21 = arith.constant 0 : index
    %c0_22 = arith.constant 0 : index
    %c0_23 = arith.constant 0 : index
    %35 = vector.load %arg7[%c0_21, %c0_22, %c0_23] : memref<1x16x32xf32, #tpu.memory_space<vmem>>, vector<1x16x32xf32>
    %36 = vector.shape_cast %35 : vector<1x16x32xf32> to vector<16x32xf32>
    %37 = vector.shape_cast %34 : vector<16x32xf32> to vector<1x16x32xf32>
    tpu.vector_store %arg7[%c0_21, %c0_22, %c0_23], %37 {strides = array<i32>} : memref<1x16x32xf32, #tpu.memory_space<vmem>>, vector<1x16x32xf32>,
    return
  }
  func.func @transform_0(%arg0: i32) -> (i32, i32, i32) {
    %c0_i32 = arith.constant 0 : i32
    %c0_i32_0 = arith.constant 0 : i32
    %c0_i32_1 = arith.constant 0 : i32
    return %arg0, %c0_i32, %c0_i32_0 : i32, i32, i32
  }
  func.func @transform_1(%arg0: i32) -> (i32, i32, i32) {
    %c0_i32 = arith.constant 0 : i32
    %c0_i32_0 = arith.constant 0 : i32
    %c0_i32_1 = arith.constant 0 : i32
    return %arg0, %c0_i32, %c0_i32_0 : i32, i32, i32
  }
  func.func @transform_2(%arg0: i32) -> (i32, i32, i32) {
    %c0_i32 = arith.constant 0 : i32
    %c0_i32_0 = arith.constant 0 : i32
    %c0_i32_1 = arith.constant 0 : i32
    return %arg0, %c0_i32, %c0_i32_0 : i32, i32, i32
  }
  func.func @transform_3(%arg0: i32) -> (i32, i32) {
    %c0_i32 = arith.constant 0 : i32
    %c0_i32_0 = arith.constant 0 : i32
    %c0_i32_1 = arith.constant 0 : i32
    return %c0_i32, %c0_i32_0 : i32, i32
  }
  func.func @transform_4(%arg0: i32) -> (i32, i32) {
    %c0_i32 = arith.constant 0 : i32
    %c0_i32_0 = arith.constant 0 : i32
    %c0_i32_1 = arith.constant 0 : i32
    return %c0_i32, %c0_i32_0 : i32, i32
  }
  func.func @transform_5(%arg0: i32) -> (i32, i32) {
    %c0_i32 = arith.constant 0 : i32
    %c0_i32_0 = arith.constant 0 : i32
    %c0_i32_1 = arith.constant 0 : i32
    return %c0_i32, %c0_i32_0 : i32, i32
  }
  func.func @transform_6(%arg0: i32) -> (i32, i32, i32) {
    %c0_i32 = arith.constant 0 : i32
    %c0_i32_0 = arith.constant 0 : i32
    %c0_i32_1 = arith.constant 0 : i32
    return %arg0, %c0_i32, %c0_i32_0 : i32, i32, i32
  }
}

module attributes {stable_mosaic.version = 11 : i64} {
  func.func @_linear_kernel(%arg0: i32, %arg1: i32, %arg2: memref<32x64xf32, #tpu.memory_space<vmem>>, %arg3: memref<64x32xbf16, #tpu.memory_space<vmem>>, %arg4: memref<1x32xf32, #tpu.memory_space<vmem>>, %arg5: memref<32x32xf32, #tpu.memory_space<vmem>>) attributes {dimension_semantics = [#tpu.dimension_semantics<parallel>, #tpu.dimension_semantics<parallel>], iteration_bounds = array<i64: 1, 1>, scalar_prefetch = 0 : i64, scratch_operands = 0 : i64, tpu.core_type = #tpu.core_type<tc>, window_params = [{transform_indices = @transform_0, window_bounds = array<i64: 32, 64>}, {transform_indices = @transform_1, window_bounds = array<i64: 64, 32>}, {transform_indices = @transform_2, window_bounds = array<i64: 1, 32>}, {transform_indices = @transform_3, window_bounds = array<i64: 32, 32>}]} {
    %c0 = arith.constant 0 : index
    %c0_0 = arith.constant 0 : index
    %0 = vector.load %arg2[%c0, %c0_0] : memref<32x64xf32, #tpu.memory_space<vmem>>, vector<32x64xf32>
    %1 = arith.truncf %0 : vector<32x64xf32> to vector<32x64xbf16>
    %c0_1 = arith.constant 0 : index
    %c0_2 = arith.constant 0 : index
    %2 = vector.load %arg3[%c0_1, %c0_2] : memref<64x32xbf16, #tpu.memory_space<vmem>>, vector<64x32xbf16>
    %cst = arith.constant dense<0.000000e+00> : vector<32x32xf32>
    %3 = tpu.matmul %1, %2, %cst {dimension_numbers = #tpu.dot_dimension_numbers<[1], [0], [0], [1], [0, 0, 1, 1], [], []>} : vector<32x64xbf16>, vector<64x32xbf16>, vector<32x32xf32> -> vector<32x32xf32>
    %c0_3 = arith.constant 0 : index
    %c0_4 = arith.constant 0 : index
    %4 = vector.load %arg4[%c0_3, %c0_4] : memref<1x32xf32, #tpu.memory_space<vmem>>, vector<1x32xf32>
    %5 = vector.broadcast %4 : vector<1x32xf32> to vector<32x32xf32>
    %6 = arith.addf %3, %5 : vector<32x32xf32>
    %c0_5 = arith.constant 0 : index
    %c0_6 = arith.constant 0 : index
    %7 = vector.load %arg5[%c0_5, %c0_6] : memref<32x32xf32, #tpu.memory_space<vmem>>, vector<32x32xf32>
    tpu.vector_store %arg5[%c0_5, %c0_6], %6 {strides = array<i32>} : memref<32x32xf32, #tpu.memory_space<vmem>>, vector<32x32xf32>,
    return
  }
  func.func @transform_0(%arg0: i32, %arg1: i32) -> (i32, i32) {
    %c0_i32 = arith.constant 0 : i32
    %c0_i32_0 = arith.constant 0 : i32
    return %arg0, %c0_i32 : i32, i32
  }
  func.func @transform_1(%arg0: i32, %arg1: i32) -> (i32, i32) {
    %c0_i32 = arith.constant 0 : i32
    %c0_i32_0 = arith.constant 0 : i32
    return %c0_i32, %arg1 : i32, i32
  }
  func.func @transform_2(%arg0: i32, %arg1: i32) -> (i32, i32) {
    %c0_i32 = arith.constant 0 : i32
    %c0_i32_0 = arith.constant 0 : i32
    return %c0_i32, %arg1 : i32, i32
  }
  func.func @transform_3(%arg0: i32, %arg1: i32) -> (i32, i32) {
    %c0_i32 = arith.constant 0 : i32
    return %arg0, %arg1 : i32, i32
  }
}

module attributes {stable_mosaic.version = 11 : i64} {
  func.func @_linear_kernel(%arg0: i32, %arg1: i32, %arg2: memref<32x32xf32, #tpu.memory_space<vmem>>, %arg3: memref<32x32xbf16, #tpu.memory_space<vmem>>, %arg4: memref<1x32xf32, #tpu.memory_space<vmem>>, %arg5: memref<32x32xf32, #tpu.memory_space<vmem>>) attributes {dimension_semantics = [#tpu.dimension_semantics<parallel>, #tpu.dimension_semantics<parallel>], iteration_bounds = array<i64: 1, 1>, scalar_prefetch = 0 : i64, scratch_operands = 0 : i64, tpu.core_type = #tpu.core_type<tc>, window_params = [{transform_indices = @transform_0, window_bounds = array<i64: 32, 32>}, {transform_indices = @transform_1, window_bounds = array<i64: 32, 32>}, {transform_indices = @transform_2, window_bounds = array<i64: 1, 32>}, {transform_indices = @transform_3, window_bounds = array<i64: 32, 32>}]} {
    %c0 = arith.constant 0 : index
    %c0_0 = arith.constant 0 : index
    %0 = vector.load %arg2[%c0, %c0_0] : memref<32x32xf32, #tpu.memory_space<vmem>>, vector<32x32xf32>
    %1 = arith.truncf %0 : vector<32x32xf32> to vector<32x32xbf16>
    %c0_1 = arith.constant 0 : index
    %c0_2 = arith.constant 0 : index
    %2 = vector.load %arg3[%c0_1, %c0_2] : memref<32x32xbf16, #tpu.memory_space<vmem>>, vector<32x32xbf16>
    %cst = arith.constant dense<0.000000e+00> : vector<32x32xf32>
    %3 = tpu.matmul %1, %2, %cst {dimension_numbers = #tpu.dot_dimension_numbers<[1], [0], [0], [1], [0, 0, 1, 1], [], []>} : vector<32x32xbf16>, vector<32x32xbf16>, vector<32x32xf32> -> vector<32x32xf32>
    %c0_3 = arith.constant 0 : index
    %c0_4 = arith.constant 0 : index
    %4 = vector.load %arg4[%c0_3, %c0_4] : memref<1x32xf32, #tpu.memory_space<vmem>>, vector<1x32xf32>
    %5 = vector.broadcast %4 : vector<1x32xf32> to vector<32x32xf32>
    %6 = arith.addf %3, %5 : vector<32x32xf32>
    %c0_5 = arith.constant 0 : index
    %c0_6 = arith.constant 0 : index
    %7 = vector.load %arg5[%c0_5, %c0_6] : memref<32x32xf32, #tpu.memory_space<vmem>>, vector<32x32xf32>
    tpu.vector_store %arg5[%c0_5, %c0_6], %6 {strides = array<i32>} : memref<32x32xf32, #tpu.memory_space<vmem>>, vector<32x32xf32>,
    return
  }
  func.func @transform_0(%arg0: i32, %arg1: i32) -> (i32, i32) {
    %c0_i32 = arith.constant 0 : i32
    %c0_i32_0 = arith.constant 0 : i32
    return %arg0, %c0_i32 : i32, i32
  }
  func.func @transform_1(%arg0: i32, %arg1: i32) -> (i32, i32) {
    %c0_i32 = arith.constant 0 : i32
    %c0_i32_0 = arith.constant 0 : i32
    return %c0_i32, %arg1 : i32, i32
  }
  func.func @transform_2(%arg0: i32, %arg1: i32) -> (i32, i32) {
    %c0_i32 = arith.constant 0 : i32
    %c0_i32_0 = arith.constant 0 : i32
    return %c0_i32, %arg1 : i32, i32
  }
  func.func @transform_3(%arg0: i32, %arg1: i32) -> (i32, i32) {
    %c0_i32 = arith.constant 0 : i32
    return %arg0, %arg1 : i32, i32
  }
}

module attributes {stable_mosaic.version = 11 : i64} {
  func.func @_rmsnorm_kernel(%arg0: i32, %arg1: memref<1x16x32xf32, #tpu.memory_space<vmem>>, %arg2: memref<16x32xf32, #tpu.memory_space<vmem>>, %arg3: memref<1x16x32xf32, #tpu.memory_space<vmem>>) attributes {dimension_semantics = [#tpu.dimension_semantics<parallel>], iteration_bounds = array<i64: 2>, scalar_prefetch = 0 : i64, scratch_operands = 0 : i64, tpu.core_type = #tpu.core_type<tc>, window_params = [{transform_indices = @transform_0, window_bounds = array<i64: 1, 16, 32>}, {pipeline_mode = #tpu.pipeline_mode<synchronous>, transform_indices = @transform_1, window_bounds = array<i64: 16, 32>}, {transform_indices = @transform_2, window_bounds = array<i64: 1, 16, 32>}]} {
    %c0 = arith.constant 0 : index
    %c0_0 = arith.constant 0 : index
    %c0_1 = arith.constant 0 : index
    %0 = vector.load %arg1[%c0, %c0_0, %c0_1] : memref<1x16x32xf32, #tpu.memory_space<vmem>>, vector<1x16x32xf32>
    %1 = vector.shape_cast %0 : vector<1x16x32xf32> to vector<16x32xf32>
    %2 = arith.mulf %1, %1 : vector<16x32xf32>
    %3 = vector.shape_cast %2 : vector<16x32xf32> to vector<1x16x32xf32>
    %cst = arith.constant dense<0.000000e+00> : vector<1xf32>
    %4 = vector.multi_reduction <add>, %3, %cst [1, 2] : vector<1x16x32xf32> to vector<1xf32>
    %5 = vector.shape_cast %4 : vector<1xf32> to vector<1x1x1xf32>
    %6 = vector.extract %5[0, 0, 0] : f32 from vector<1x1x1xf32>
    %7 = math.sqrt %6 : f32
    %cst_2 = arith.constant 0.0441941731 : f32
    %8 = arith.mulf %7, %cst_2 : f32
    %c0_3 = arith.constant 0 : index
    %c0_4 = arith.constant 0 : index
    %9 = vector.load %arg2[%c0_3, %c0_4] : memref<16x32xf32, #tpu.memory_space<vmem>>, vector<16x32xf32>
    %10 = vector.broadcast %8 : f32 to vector<16x32xf32>
    %11 = arith.divf %1, %10 : vector<16x32xf32>
    %12 = arith.mulf %9, %11 : vector<16x32xf32>
    %c0_5 = arith.constant 0 : index
    %c0_6 = arith.constant 0 : index
    %c0_7 = arith.constant 0 : index
    %13 = vector.load %arg3[%c0_5, %c0_6, %c0_7] : memref<1x16x32xf32, #tpu.memory_space<vmem>>, vector<1x16x32xf32>
    %14 = vector.shape_cast %13 : vector<1x16x32xf32> to vector<16x32xf32>
    %15 = vector.shape_cast %12 : vector<16x32xf32> to vector<1x16x32xf32>
    tpu.vector_store %arg3[%c0_5, %c0_6, %c0_7], %15 {strides = array<i32>} : memref<1x16x32xf32, #tpu.memory_space<vmem>>, vector<1x16x32xf32>,
    return
  }
  func.func @transform_0(%arg0: i32) -> (i32, i32, i32) {
    %c0_i32 = arith.constant 0 : i32
    %c0_i32_0 = arith.constant 0 : i32
    %c0_i32_1 = arith.constant 0 : i32
    return %arg0, %c0_i32, %c0_i32_0 : i32, i32, i32
  }
  func.func @transform_1(%arg0: i32) -> (i32, i32) {
    %c0_i32 = arith.constant 0 : i32
    %c0_i32_0 = arith.constant 0 : i32
    %c0_i32_1 = arith.constant 0 : i32
    return %c0_i32, %c0_i32_0 : i32, i32
  }
  func.func @transform_2(%arg0: i32) -> (i32, i32, i32) {
    %c0_i32 = arith.constant 0 : i32
    %c0_i32_0 = arith.constant 0 : i32
    %c0_i32_1 = arith.constant 0 : i32
    return %arg0, %c0_i32, %c0_i32_0 : i32, i32, i32
  }
}

module attributes {stable_mosaic.version = 11 : i64} {
  func.func @_swiglu_kernel(%arg0: i32, %arg1: i32, %arg2: memref<1xf32, #tpu.memory_space<smem>>, %arg3: memref<32x32xf32, #tpu.memory_space<vmem>>, %arg4: memref<1x32x64xbf16, #tpu.memory_space<vmem>>, %arg5: memref<1x1x64xf32, #tpu.memory_space<vmem>>, %arg6: memref<32x32xf32, #tpu.memory_space<vmem>>) attributes {dimension_semantics = [#tpu.dimension_semantics<parallel>, #tpu.dimension_semantics<parallel>], iteration_bounds = array<i64: 1, 1>, scalar_prefetch = 0 : i64, scratch_operands = 0 : i64, tpu.core_type = #tpu.core_type<tc>, window_params = [{transform_indices = @transform_0, window_bounds = array<i64: 1>}, {transform_indices = @transform_1, window_bounds = array<i64: 32, 32>}, {transform_indices = @transform_2, window_bounds = array<i64: 1, 32, 64>}, {transform_indices = @transform_3, window_bounds = array<i64: 1, 1, 64>}, {transform_indices = @transform_4, window_bounds = array<i64: 32, 32>}]} {
    %c0 = arith.constant 0 : index
    %c0_0 = arith.constant 0 : index
    %0 = vector.load %arg3[%c0, %c0_0] : memref<32x32xf32, #tpu.memory_space<vmem>>, vector<32x32xf32>
    %1 = arith.truncf %0 : vector<32x32xf32> to vector<32x32xbf16>
    %c0_1 = arith.constant 0 : index
    %c0_2 = arith.constant 0 : index
    %c0_3 = arith.constant 0 : index
    %2 = vector.load %arg4[%c0_1, %c0_2, %c0_3] : memref<1x32x64xbf16, #tpu.memory_space<vmem>>, vector<1x32x64xbf16>
    %3 = vector.shape_cast %2 : vector<1x32x64xbf16> to vector<32x64xbf16>
    %cst = arith.constant dense<0.000000e+00> : vector<32x64xf32>
    %4 = tpu.matmul %1, %3, %cst {dimension_numbers = #tpu.dot_dimension_numbers<[1], [0], [0], [1], [0, 0, 1, 1], [], []>} : vector<32x32xbf16>, vector<32x64xbf16>, vector<32x64xf32> -> vector<32x64xf32>
    %c0_4 = arith.constant 0 : index
    %c0_5 = arith.constant 0 : index
    %c0_6 = arith.constant 0 : index
    %5 = vector.load %arg5[%c0_4, %c0_5, %c0_6] : memref<1x1x64xf32, #tpu.memory_space<vmem>>, vector<1x1x64xf32>
    %6 = vector.shape_cast %5 : vector<1x1x64xf32> to vector<1x64xf32>
    %7 = vector.broadcast %6 : vector<1x64xf32> to vector<32x64xf32>
    %8 = arith.addf %4, %7 : vector<32x64xf32>
    %9 = vector.extract_strided_slice %8 {offsets = [0, 0], sizes = [32, 32], strides = [1, 1]} : vector<32x64xf32> to vector<32x32xf32>
    %10 = vector.extract_strided_slice %8 {offsets = [0, 32], sizes = [32, 32], strides = [1, 1]} : vector<32x64xf32> to vector<32x32xf32>
    %c0_7 = arith.constant 0 : index
    %11 = memref.load %arg2[%c0_7] : memref<1xf32, #tpu.memory_space<smem>>
    %12 = vector.broadcast %11 : f32 to vector<32x32xf32>
    %13 = arith.mulf %12, %9 : vector<32x32xf32>
    %14 = arith.negf %13 : vector<32x32xf32>
    %15 = math.exp %14 : vector<32x32xf32>
    %cst_8 = arith.constant 1.000000e+00 : f32
    %16 = vector.broadcast %cst_8 : f32 to vector<32x32xf32>
    %17 = arith.addf %16, %15 : vector<32x32xf32>
    %18 = arith.divf %16, %17 : vector<32x32xf32>
    %19 = arith.mulf %9, %18 : vector<32x32xf32>
    %20 = arith.mulf %19, %10 : vector<32x32xf32>
    %c0_9 = arith.constant 0 : index
    %c0_10 = arith.constant 0 : index
    %21 = vector.load %arg6[%c0_9, %c0_10] : memref<32x32xf32, #tpu.memory_space<vmem>>, vector<32x32xf32>
    tpu.vector_store %arg6[%c0_9, %c0_10], %20 {strides = array<i32>} : memref<32x32xf32, #tpu.memory_space<vmem>>, vector<32x32xf32>,
    return
  }
  func.func @transform_0(%arg0: i32, %arg1: i32) -> i32 {
    %c0_i32 = arith.constant 0 : i32
    %c0_i32_0 = arith.constant 0 : i32
    return %c0_i32 : i32
  }
  func.func @transform_1(%arg0: i32, %arg1: i32) -> (i32, i32) {
    %c0_i32 = arith.constant 0 : i32
    %c0_i32_0 = arith.constant 0 : i32
    return %arg0, %c0_i32 : i32, i32
  }
  func.func @transform_2(%arg0: i32, %arg1: i32) -> (i32, i32, i32) {
    %c0_i32 = arith.constant 0 : i32
    %c0_i32_0 = arith.constant 0 : i32
    %c0_i32_1 = arith.constant 0 : i32
    return %arg1, %c0_i32, %c0_i32_0 : i32, i32, i32
  }
  func.func @transform_3(%arg0: i32, %arg1: i32) -> (i32, i32, i32) {
    %c0_i32 = arith.constant 0 : i32
    %c0_i32_0 = arith.constant 0 : i32
    %c0_i32_1 = arith.constant 0 : i32
    return %arg1, %c0_i32, %c0_i32_0 : i32, i32, i32
  }
  func.func @transform_4(%arg0: i32, %arg1: i32) -> (i32, i32) {
    %c0_i32 = arith.constant 0 : i32
    return %arg0, %arg1 : i32, i32
  }
}

</mosaic_0001>

<llo_original>
// kernel: _lambda_.7
$region0: #{_lambda_.7}
  #allocation0 [shape = 'u32[]', space=smem, size = 0x4, offset = 0x4, fixed_abs, tag = 'smem constant byte address 0x4 - core index']
  #allocation1 [shape = 'u32[144,128]{1,0:T(1,128)}', space=vmem, size = 0x12000, scoped, tag = 'internal scratch']
  %s0 = inlined_call_operand.hbm [shape: f32[2,16,32], index: 0, kind: input, shape index: {}]
  %s1 = inlined_call_operand.vmem [shape: f32[16,32], index: 1, kind: input, shape index: {}]
  %s2 = inlined_call_operand.vmem [shape: f32[2,16,32], index: 2, kind: output, shape index: {}]
  %s3 = sld [smem:[#allocation0]]
  $region45: #{_lambda_.7} parent=0
    _
  %s5 = ssub.s32 1, %s3
  %s6 = scalar_select 0, %s5, %s3
  $region1: #{_lambda_.7} parent=0
    #allocation2 [shape = 'u8[16384]{0}', space=vmem, size = 0x4000, scoped, tag = 'input window, operand 0']
    #allocation3 [shape = 's32[2]{0}', space=sflag, size = 0x8, scoped, tag = 'scoped memory for _lambda_.7']
    %7 = vsyncpa [#allocation3], 0
    %s8 = scalar_lea.sflag [#allocation3], 1
    %9 = vsyncpa %s8, 0
    loop: start=0, step=1, limit=4
    $region2: #{_lambda_.7} parent=1 // loop_pre_header
      _
    $region3: #{_lambda_.7} parent=1 // loop_header
      %s11 = sphi 0, %s15
      %p12 = scmp.ge.s32.totalorder %s11, 4
      %s21 = sphi 0, %s23
      %s24 = sphi 0, %s21
      %s25 = sphi 0, %s24
      %s41 = sphi 0, %s25
      %s45 = sphi 0, %s45
      %s47 = sphi 0, %s45
      %s48 = sphi 0, %s47
      %s62 = sphi 0, %s48
      %s68 = sphi 0, %s70
      %s71 = sphi 0, %s68
      %s72 = sphi 0, %s71
      %s88 = sphi 0, %s72
    $region4: #{_lambda_.7} parent=1 // loop_header_branch
      %14 = sbr.rel (%p12) target = $region8
    $region5: #{_lambda_.7} parent=1 // loop_body
      %s16 = ssub.s32 %s11, 1
      %s17 = ssub.s32 %s11, 2
      %s18 = sadd.s32 %s11, 1
      %s19 = ssub.s32 %s11, %s18
      %p20 = scmp.eq.s32.totalorder %s19, 0
      %s22 = sadd.s32 %s21, 1
      %s23 = scalar_select %p20, %s21, %s22
      %p26 = pneg %p20
      %p27 = scmp.eq.s32.totalorder %s11, 1
      %p28 = por %p26, %p27
      %p29 = scmp.ne.s32.totalorder %s21, %s24
      %p30 = scmp.eq.s32.totalorder %s11, 0
      %p31 = por %p29, %p30
      %p32 = scmp.ne.s32.totalorder %s21, %s24
      %p33 = scmp.eq.s32.totalorder %s16, 1
      %p34 = por %p32, %p33
      %p35 = scmp.ne.s32.totalorder %s24, %s25
      %p36 = scmp.eq.s32.totalorder %s16, 0
      %p37 = por %p35, %p36
      %p38 = scmp.ne.s32.totalorder %s24, %s25
      %p39 = scmp.eq.s32.totalorder %s17, 1
      %p40 = por %p38, %p39
      %p42 = scmp.ne.s32.totalorder %s25, %s41
      %p43 = scmp.eq.s32.totalorder %s17, 0
      %p44 = por %p42, %p43
      %s46 = sadd.s32 %s45, 1
      %p49 = scmp.eq.s32.totalorder %s11, 1
      %p50 = scmp.ne.s32.totalorder %s45, %s47
      %p51 = scmp.eq.s32.totalorder %s11, 0
      %p52 = por %p50, %p51
      %p53 = scmp.ne.s32.totalorder %s45, %s47
      %p54 = scmp.eq.s32.totalorder %s16, 1
      %p55 = por %p53, %p54
      %p56 = scmp.ne.s32.totalorder %s47, %s48
      %p57 = scmp.eq.s32.totalorder %s16, 0
      %p58 = por %p56, %p57
      %p59 = scmp.ne.s32.totalorder %s47, %s48
      %p60 = scmp.eq.s32.totalorder %s17, 1
      %p61 = por %p59, %p60
      %p63 = scmp.ne.s32.totalorder %s48, %s62
      %p64 = scmp.eq.s32.totalorder %s17, 0
      %p65 = por %p63, %p64
      %s66 = ssub.s32 %s11, %s18
      %p67 = scmp.eq.s32.totalorder %s66, 0
      %s69 = sadd.s32 %s68, 1
      %s70 = scalar_select %p67, %s68, %s69
      %p73 = pneg %p67
      %p74 = scmp.eq.s32.totalorder %s11, 1
      %p75 = por %p73, %p74
      %p76 = scmp.ne.s32.totalorder %s68, %s71
      %p77 = scmp.eq.s32.totalorder %s11, 0
      %p78 = por %p76, %p77
      %p79 = scmp.ne.s32.totalorder %s68, %s71
      %p80 = scmp.eq.s32.totalorder %s16, 1
      %p81 = por %p79, %p80
      %p82 = scmp.ne.s32.totalorder %s71, %s72
      %p83 = scmp.eq.s32.totalorder %s16, 0
      %p84 = por %p82, %p83
      %p85 = scmp.ne.s32.totalorder %s71, %s72
      %p86 = scmp.eq.s32.totalorder %s17, 1
      %p87 = por %p85, %p86
      %p89 = scmp.ne.s32.totalorder %s72, %s88
      %p90 = scmp.eq.s32.totalorder %s17, 0
      %p91 = por %p89, %p90
      %p92 = scmp.le.s32.totalorder 1, %s11
      %p93 = scmp.lt.s32.totalorder %s11, 3
      %p94 = pnand %p92, %p93
      %p95 = pneg %p94
      // Predicated region
      $region9: #{_lambda_.7} parent=5 // pred_check
        _
      $region10: #{_lambda_.7} parent=5 // pred_check_branch
        %97 = sbr.rel (%p94) target = $region12
      $region11: #{_lambda_.7} parent=5 // pred_region
        %s98 = ssub.s32 %s11, 1
        // Predicated region
        $region13: #{_lambda_.7} parent=11 // pred_check
          %p99 = pneg %p58
        $region14: #{_lambda_.7} parent=11 // pred_check_branch
          %101 = sbr.rel (%p99) target = $region16
        $region15: #{_lambda_.7} parent=11 // pred_region
          _
        $region16: #{_lambda_.7} parent=11 // pred_fallthru
          _
      $region12: #{_lambda_.7} parent=5 // pred_fallthru
        _
      %p102 = scmp.lt.s32.totalorder %s11, 2
      // Predicated region
      $region17: #{_lambda_.7} parent=5 // pred_check
        %p103 = pneg %p102
      $region18: #{_lambda_.7} parent=5 // pred_check_branch
        %105 = sbr.rel (%p103) target = $region20
      $region19: #{_lambda_.7} parent=5 // pred_region
        // Predicated region
        $region21: #{_lambda_.7} parent=19 // pred_check
          %p106 = pneg %p31
        $region22: #{_lambda_.7} parent=19 // pred_check_branch
          %108 = sbr.rel (%p106) target = $region24
        $region23: #{_lambda_.7} parent=19 // pred_region
          %s109 = sand.u32 %s21, 1
          %s110 = scalar_lea.sflag [#allocation3], %s109
          %s111 = sand.u32 %s21, 1
          %s112 = smul.addr %s111, 16
          %s113 = scalar_lea.vmem [#allocation2], %s112
          %s115 = ssub.s32 256, 256
          %116 = vsyncadd %s110, %s115
          %s117 = smul.addr %s11, 2
          %s118 = smul.addr %s117, 128
          %s119 = scalar_lea.hbm %s0, %s118
          %s120 = sshll.u32 %s113, 4
          %s121 = int_to_ptr.vmem [resolvable:$true] %s120
          %126 = dma.hbm_to_vmem [thread:$0]  %s119, 256, %s121, %s110, 128, 128, 8
        $region24: #{_lambda_.7} parent=19 // pred_fallthru
          _
      $region20: #{_lambda_.7} parent=5 // pred_fallthru
        _
      %p127 = scmp.le.s32.totalorder 1, %s11
      %p128 = scmp.lt.s32.totalorder %s11, 3
      %p129 = pnand %p127, %p128
      %p130 = pneg %p129
      // Predicated region
      $region25: #{_lambda_.7} parent=5 // pred_check
        _
      $region26: #{_lambda_.7} parent=5 // pred_check_branch
        %132 = sbr.rel (%p129) target = $region28
      $region27: #{_lambda_.7} parent=5 // pred_region
        %s133 = ssub.s32 %s11, 1
        %s134 = sand.u32 %s24, 1
        %s135 = scalar_lea.sflag [#allocation3], %s134
        %s136 = sand.u32 %s24, 1
        %s137 = smul.addr %s136, 16
        %s138 = scalar_lea.vmem [#allocation2], %s137
        // Predicated region
        $region29: #{_lambda_.7} parent=27 // pred_check
          %p139 = pneg %p37
        $region30: #{_lambda_.7} parent=27 // pred_check_branch
          %141 = sbr.rel (%p139) target = $region32
        $region31: #{_lambda_.7} parent=27 // pred_region
          %142 = dma.done %s135, 256
        $region32: #{_lambda_.7} parent=27 // pred_fallthru
          _
        %s143 = sand.u32 %s24, 1
        %s144 = scalar_lea.sflag [#allocation3], %s143
        %s145 = sand.u32 %s24, 1
        %s146 = smul.addr %s145, 16
        %s147 = scalar_lea.vmem [#allocation2], %s146
        %p148 = pneg %p37
        %p149 = pneg %p34
        %p150 = pneg %p58
        %p151 = pneg %p55
        %p152 = pneg %p84
        %p153 = pneg %p81
        %p154 = scmp.lt.s32.totalorder %s16, 1
        %s155 = scalar_select %p154, %s16, 1
        %s156 = smul.addr %s155, 2
        %s157 = smul.addr %s156, 8
        %s158 = scalar_lea.vmem %s2, %s157
        %p159 = scmp.lt.s32.totalorder %s16, 1
        %s160 = scalar_select %p159, %s16, 1
        %s161 = smul.addr %s160, 2
        %s162 = smul.addr %s161, 8
        %s163 = scalar_lea.vmem %s2, %s162
        %v164 = vld [vmem:[%s138] sm:$0xff]
        %v165 = vld [vmem:[%s138 + $0x8] sm:$0xff]
        %v166 = vmul.f32 %v164, %v164
        %v167 = vmul.f32 %v165, %v165
        %vm168 = vcmask 261120
        %v169 = vsel %vm168, %v166, 0.0
        %v170 = vsel %vm168, %v167, 0.0
        %v171 = vadd.f32 %v169, %v170
        %172 = vadd.xlane.f32.xlu0 %v171
        %v173 = vpop.xlane.xlu0 %172
        %v174 = vrot.slane %v173, 4
        %v175 = vadd.f32 %v173, %v174
        %v176 = vrot.slane %v175, 2
        %v177 = vadd.f32 %v175, %v176
        %v178 = vrot.slane %v177, 1
        %v179 = vadd.f32 %v177, %v178
        %s180 = vtos %v179
        %v181 = vstv %s180
        %v182 = vrsqrt.pop %v181
        %v183 = vmul.f32 %v181, %v182
        %vm184 = vcmp.eq.f32.partialorder %v181, inf
        %v185 = vsel %vm184, %v181, %v183
        %vm186 = vcmp.eq.f32.partialorder %v181, 0.0
        %v187 = vand.u32 %v181, 2147483648
        %v188 = vsel %vm186, %v187, %v185
        %s189 = vtos %v188
        %s190 = smul.f32 %s189, 0.044194173
        %v191 = vld [vmem:[%s1] sm:$0xff]
        %v192 = vld [vmem:[%s1 + $0x8] sm:$0xff]
        %v193 = vstv %s190
        %v194 = vrcp.pop %v193
        %v195 = vmul.f32 %v164, %v194
        %v196 = vmul.f32 %v165, %v194
        %v197 = vmul.f32 %v191, %v195
        %v198 = vmul.f32 %v192, %v196
        %199 = vst.msk [vmem:[%s163] sm:$0xff] %vm168, %v197
        %200 = vst.msk [vmem:[%s163 + $0x8] sm:$0xff] %vm168, %v198
        %p201 = scmp.lt.s32.totalorder %s16, 1
        %s202 = scalar_select %p201, %s16, 1
        %s203 = smul.addr %s202, 2
        %s204 = smul.addr %s203, 8
        %s205 = scalar_lea.vmem %s2, %s204
        // Predicated region
        $region33: #{_lambda_.7} parent=27 // pred_check
          %p206 = pneg %p81
        $region34: #{_lambda_.7} parent=27 // pred_check_branch
          %208 = sbr.rel (%p206) target = $region36
        $region35: #{_lambda_.7} parent=27 // pred_region
          _
        $region36: #{_lambda_.7} parent=27 // pred_fallthru
          _
      $region28: #{_lambda_.7} parent=5 // pred_fallthru
        _
      %p209 = scmp.le.s32.totalorder 2, %s11
      // Predicated region
      $region37: #{_lambda_.7} parent=5 // pred_check
        %p210 = pneg %p209
      $region38: #{_lambda_.7} parent=5 // pred_check_branch
        %212 = sbr.rel (%p210) target = $region40
      $region39: #{_lambda_.7} parent=5 // pred_region
        %s213 = ssub.s32 %s11, 2
        // Predicated region
        $region41: #{_lambda_.7} parent=39 // pred_check
          %p214 = pneg %p87
        $region42: #{_lambda_.7} parent=39 // pred_check_branch
          %216 = sbr.rel (%p214) target = $region44
        $region43: #{_lambda_.7} parent=39 // pred_region
          %p217 = scmp.lt.s32.totalorder %s17, 1
          %s218 = scalar_select %p217, %s17, 1
          %s219 = smul.addr %s218, 2
          %s220 = smul.addr %s219, 8
          %s221 = scalar_lea.vmem %s2, %s220
        $region44: #{_lambda_.7} parent=39 // pred_fallthru
          _
      $region40: #{_lambda_.7} parent=5 // pred_fallthru
        _
    $region6: #{_lambda_.7} parent=1 // loop_footer
      %s15 = sadd.s32 1, %s11
    $region7: #{_lambda_.7} parent=1 // loop_footer_branch
      %10 = sbr.rel target = $region3
    $region8: #{_lambda_.7} parent=1 // loop_exit
      _
    %222 = vsyncpa [#allocation3], 1
    %s223 = scalar_lea.sflag [#allocation3], 1
    %224 = vsyncpa %s223, 1

// kernel: _lambda_.8
$region0: #{_lambda_.8}
  #allocation0 [shape = 'u32[]', space=smem, size = 0x4, offset = 0x4, fixed_abs, tag = 'smem constant byte address 0x4 - core index']
  #allocation1 [shape = 'u32[144,128]{1,0:T(1,128)}', space=vmem, size = 0x12000, scoped, tag = 'internal scratch']
  %s0 = inlined_call_operand.vmem [shape: f32[32,32], index: 0, kind: input, shape index: {}]
  %s1 = inlined_call_operand.vmem [shape: bf16[32,192], index: 1, kind: input, shape index: {}]
  %s2 = inlined_call_operand.vmem [shape: f32[1,192], index: 2, kind: input, shape index: {}]
  %s3 = inlined_call_operand.vmem [shape: f32[32,192], index: 3, kind: output, shape index: {}]
  %s4 = sld [smem:[#allocation0]]
  $region22: #{_lambda_.8} parent=0
    _
  %s6 = ssub.s32 1, %s4
  %s7 = scalar_select 0, %s6, %s4
  // Predicated region
  $region2: #{_lambda_.8} parent=0 // pred_check
    _
  $region3: #{_lambda_.8} parent=0 // pred_check_branch
    %9 = sbr.rel (0) target = $region5
  $region4: #{_lambda_.8} parent=0 // pred_region
    _
  $region5: #{_lambda_.8} parent=0 // pred_fallthru
    _
  // Predicated region
  $region6: #{_lambda_.8} parent=0 // pred_check
    _
  $region7: #{_lambda_.8} parent=0 // pred_check_branch
    %11 = sbr.rel (0) target = $region9
  $region8: #{_lambda_.8} parent=0 // pred_region
    _
  $region9: #{_lambda_.8} parent=0 // pred_fallthru
    _
  // Predicated region
  $region10: #{_lambda_.8} parent=0 // pred_check
    _
  $region11: #{_lambda_.8} parent=0 // pred_check_branch
    %13 = sbr.rel (0) target = $region13
  $region12: #{_lambda_.8} parent=0 // pred_region
    _
  $region13: #{_lambda_.8} parent=0 // pred_fallthru
    _
  %v15 = vld [vmem:[%s0] sm:$0xff]
  %v16 = vld [vmem:[%s0 + $0x8] sm:$0xff]
  %v17 = vld [vmem:[%s0 + $0x10] sm:$0xff]
  %v18 = vld [vmem:[%s0 + $0x18] sm:$0xff]
  %v19 = vpack.c.bf16 %v16, %v15
  %v20 = vpack.c.bf16 %v18, %v17
  %v21 = vld [vmem:[%s1] sm:$0xff]
  %v22 = vld [vmem:[%s1 + $0x8] sm:$0xff]
  %v23 = vld [vmem:[%s1 + $0x10] sm:$0xff]
  %v24 = vld [vmem:[%s1 + $0x18] sm:$0xff]
  %v25 = vld [vmem:[%s2] sm:$0x3]
  %v27 = vlaneseq
  %v28 = vshrl.u32 %v27, 7
  %v29 = vsub.s32 0, %v28
  %v30 = vrot.slane %v25, %v29
  %v31 = vlaneseq
  %v32 = vshrl.u32 %v31, 7
  %v33 = vsub.s32 1, %v32
  %v34 = vrot.slane %v25, %v33
  %v41 = vunpack.c.l.b16 %v21
  %v42 = vunpack.c.h.b16 %v21
  %v43 = vunpack.c.l.b16 %v22
  %v44 = vunpack.c.h.b16 %v22
  %v45 = vunpack.c.l.b16 %v23
  %v46 = vunpack.c.h.b16 %v23
  %v47 = vunpack.c.l.b16 %v24
  %v48 = vunpack.c.h.b16 %v24
  %v49 = vpack.c.b16 %v43, %v41
  %v50 = vpack.c.b16 %v44, %v42
  %v51 = vpack.c.b16 %v47, %v45
  %v52 = vpack.c.b16 %v48, %v46
  %vm57 = vcmask 261120
  %v59 = vsel %vm57, %v19, 0
  %v62 = vsel %vm57, %v20, 0
  %64 = vmatprep.subr.bf16.mxu0 %v50
  %65 = vmatpush1.bf16.msra.mxu0 %v49
  %66 = vmatprep.subr.bf16.mxu0 %v52
  %67 = vmatpush1.bf16.msra.mxu0 %v51
  %68 = vmatprep.subr.bf16.mxu0 0
  %69 = vmatpush1.bf16.msra.mxu0 0
  %70 = vmatprep.subr.bf16.mxu0 0
  %71 = vmatpush1.bf16.msra.mxu0 0
  %72 = vmatprep.subr.bf16.mxu0 0
  %73 = vmatpush1.bf16.msra.mxu0 0
  %74 = vmatprep.subr.bf16.mxu0 0
  %75 = vmatpush1.bf16.msra.mxu0 0
  %76 = vmatprep.subr.bf16.mxu0 0
  %77 = vmatpush1.bf16.msra.mxu0 0
  %78 = vmatprep.subr.bf16.mxu0 0
  %79 = vmatpush1.bf16.msra.mxu0 0
  %80 = vmatprep.subr.bf16.mxu0 0
  %81 = vmatpush1.bf16.msra.mxu0 0
  %82 = vmatprep.subr.bf16.mxu0 0
  %83 = vmatpush1.bf16.msra.mxu0 0
  %84 = vmatprep.subr.bf16.mxu0 0
  %85 = vmatpush1.bf16.msra.mxu0 0
  %86 = vmatprep.subr.bf16.mxu0 0
  %87 = vmatpush1.bf16.msra.mxu0 0
  %88 = vmatprep.subr.bf16.mxu0 0
  %89 = vmatpush1.bf16.msra.mxu0 0
  %90 = vmatprep.subr.bf16.mxu0 0
  %91 = vmatpush1.bf16.msra.mxu0 0
  %92 = vmatprep.subr.bf16.mxu0 0
  %93 = vmatpush1.bf16.msra.mxu0 0
  %94 = vmatprep.subr.bf16.mxu0 0
  %95 = vmatpush1.bf16.msra.mxu0 0
  %96 = vmatprep.mubr.bf16.mxu0 0
  %97 = vmatmul.mubr.bf16.gmra.mrb[0].mxu0 %v59
  %v98 = vpop.f32.mrb[0].mxu0
  %v99 = vadd.f32 %v30, %v98
  %v100 = vpop.f32.mrb[0].mxu0
  %v101 = vadd.f32 %v34, %v100
  %v102 = vpop.f32.mrb[0].mxu0
  %v103 = vadd.f32 %v30, %v102
  %v104 = vpop.f32.mrb[0].mxu0
  %v105 = vadd.f32 %v34, %v104
  %106 = vmatprep.mubr.bf16.mxu0 0
  %107 = vmatmul.mubr.bf16.gmra.mrb[0].mxu0 %v62
  %v108 = vpop.f32.mrb[0].mxu0
  %v109 = vadd.f32 %v30, %v108
  %v110 = vpop.f32.mrb[0].mxu0
  %v111 = vadd.f32 %v34, %v110
  %v112 = vpop.f32.mrb[0].mxu0
  %v113 = vadd.f32 %v30, %v112
  %v114 = vpop.f32.mrb[0].mxu0
  %v115 = vadd.f32 %v34, %v114
  %116 = vdwg.mxu0
  %117 = vst [vmem:[%s3] sm:$0xff] %v99
  %vm118 = vcmask 523264
  %119 = vst.msk [vmem:[%s3 + $0x8] sm:$0xff] %vm118, %v101
  %120 = vst [vmem:[%s3 + $0x10] sm:$0xff] %v103
  %121 = vst.msk [vmem:[%s3 + $0x18] sm:$0xff] %vm118, %v105
  %122 = vst [vmem:[%s3 + $0x20] sm:$0xff] %v109
  %123 = vst.msk [vmem:[%s3 + $0x28] sm:$0xff] %vm118, %v111
  %124 = vst [vmem:[%s3 + $0x30] sm:$0xff] %v113
  %125 = vst.msk [vmem:[%s3 + $0x38] sm:$0xff] %vm118, %v115
  // Predicated region
  $region14: #{_lambda_.8} parent=0 // pred_check
    _
  $region15: #{_lambda_.8} parent=0 // pred_check_branch
    %127 = sbr.rel (0) target = $region17
  $region16: #{_lambda_.8} parent=0 // pred_region
    _
  $region17: #{_lambda_.8} parent=0 // pred_fallthru
    _
  // Predicated region
  $region18: #{_lambda_.8} parent=0 // pred_check
    _
  $region19: #{_lambda_.8} parent=0 // pred_check_branch
    %129 = sbr.rel (0) target = $region21
  $region20: #{_lambda_.8} parent=0 // pred_region
    _
  $region21: #{_lambda_.8} parent=0 // pred_fallthru
    _

// kernel: _lambda_.10
$region0: #{_lambda_.10}
  #allocation0 [shape = 'u32[]', space=smem, size = 0x4, offset = 0x4, fixed_abs, tag = 'smem constant byte address 0x4 - core index']
  #allocation1 [shape = 'u32[144,128]{1,0:T(1,128)}', space=vmem, size = 0x12000, scoped, tag = 'internal scratch']
  %s0 = inlined_call_operand.vmem [shape: f32[32,64], index: 0, kind: input, shape index: {}]
  %s1 = inlined_call_operand.vmem [shape: bf16[64,32], index: 1, kind: input, shape index: {}]
  %s2 = inlined_call_operand.vmem [shape: f32[1,32], index: 2, kind: input, shape index: {}]
  %s3 = inlined_call_operand.vmem [shape: f32[32,32], index: 3, kind: output, shape index: {}]
  %s4 = sld [smem:[#allocation0]]
  $region22: #{_lambda_.10} parent=0
    _
  %s6 = ssub.s32 1, %s4
  %s7 = scalar_select 0, %s6, %s4
  // Predicated region
  $region2: #{_lambda_.10} parent=0 // pred_check
    _
  $region3: #{_lambda_.10} parent=0 // pred_check_branch
    %9 = sbr.rel (0) target = $region5
  $region4: #{_lambda_.10} parent=0 // pred_region
    _
  $region5: #{_lambda_.10} parent=0 // pred_fallthru
    _
  // Predicated region
  $region6: #{_lambda_.10} parent=0 // pred_check
    _
  $region7: #{_lambda_.10} parent=0 // pred_check_branch
    %11 = sbr.rel (0) target = $region9
  $region8: #{_lambda_.10} parent=0 // pred_region
    _
  $region9: #{_lambda_.10} parent=0 // pred_fallthru
    _
  // Predicated region
  $region10: #{_lambda_.10} parent=0 // pred_check
    _
  $region11: #{_lambda_.10} parent=0 // pred_check_branch
    %13 = sbr.rel (0) target = $region13
  $region12: #{_lambda_.10} parent=0 // pred_region
    _
  $region13: #{_lambda_.10} parent=0 // pred_fallthru
    _
  %v15 = vld [vmem:[%s0] sm:$0xff]
  %v16 = vld [vmem:[%s0 + $0x8] sm:$0xff]
  %v17 = vld [vmem:[%s0 + $0x10] sm:$0xff]
  %v18 = vld [vmem:[%s0 + $0x18] sm:$0xff]
  %v19 = vpack.c.bf16 %v16, %v15
  %v20 = vpack.c.bf16 %v18, %v17
  %v21 = vld [vmem:[%s1] sm:$0xf]
  %v22 = vld [vmem:[%s1 + $0x4] sm:$0xf]
  %v23 = vld [vmem:[%s1 + $0x8] sm:$0xf]
  %v24 = vld [vmem:[%s1 + $0xc] sm:$0xf]
  %v25 = vld [vmem:[%s1 + $0x10] sm:$0xf]
  %v26 = vld [vmem:[%s1 + $0x14] sm:$0xf]
  %v27 = vld [vmem:[%s1 + $0x18] sm:$0xf]
  %v28 = vld [vmem:[%s1 + $0x1c] sm:$0xf]
  %v29 = vld [vmem:[%s2] sm:$0x1]
  %v31 = vlaneseq
  %v32 = vshrl.u32 %v31, 7
  %v33 = vsub.s32 0, %v32
  %v34 = vrot.slane %v29, %v33
  %v44 = vunpack.c.l.b16 %v21
  %v45 = vunpack.c.l.b16 %v22
  %v46 = vunpack.c.l.b16 %v23
  %v47 = vunpack.c.l.b16 %v24
  %v48 = vunpack.c.l.b16 %v25
  %v49 = vunpack.c.l.b16 %v26
  %v50 = vunpack.c.l.b16 %v27
  %v51 = vunpack.c.l.b16 %v28
  %v52 = vpack.c.b16 %v45, %v44
  %v53 = vpack.c.b16 %v47, %v46
  %v54 = vpack.c.b16 %v49, %v48
  %v55 = vpack.c.b16 %v51, %v50
  %vm60 = vcmask 523264
  %v62 = vsel %vm60, %v19, 0
  %v65 = vsel %vm60, %v20, 0
  %67 = vmatprep.subr.bf16.mxu0 0
  %68 = vmatpush1.bf16.msra.mxu0 %v52
  %69 = vmatprep.subr.bf16.mxu0 0
  %70 = vmatpush1.bf16.msra.mxu0 %v53
  %71 = vmatprep.subr.bf16.mxu0 0
  %72 = vmatpush1.bf16.msra.mxu0 %v54
  %73 = vmatprep.subr.bf16.mxu0 0
  %74 = vmatpush1.bf16.msra.mxu0 %v55
  %75 = vmatprep.subr.bf16.mxu0 0
  %76 = vmatpush1.bf16.msra.mxu0 0
  %77 = vmatprep.subr.bf16.mxu0 0
  %78 = vmatpush1.bf16.msra.mxu0 0
  %79 = vmatprep.subr.bf16.mxu0 0
  %80 = vmatpush1.bf16.msra.mxu0 0
  %81 = vmatprep.subr.bf16.mxu0 0
  %82 = vmatpush1.bf16.msra.mxu0 0
  %83 = vmatprep.subr.bf16.mxu0 0
  %84 = vmatpush1.bf16.msra.mxu0 0
  %85 = vmatprep.subr.bf16.mxu0 0
  %86 = vmatpush1.bf16.msra.mxu0 0
  %87 = vmatprep.subr.bf16.mxu0 0
  %88 = vmatpush1.bf16.msra.mxu0 0
  %89 = vmatprep.subr.bf16.mxu0 0
  %90 = vmatpush1.bf16.msra.mxu0 0
  %91 = vmatprep.subr.bf16.mxu0 0
  %92 = vmatpush1.bf16.msra.mxu0 0
  %93 = vmatprep.subr.bf16.mxu0 0
  %94 = vmatpush1.bf16.msra.mxu0 0
  %95 = vmatprep.subr.bf16.mxu0 0
  %96 = vmatpush1.bf16.msra.mxu0 0
  %97 = vmatprep.subr.bf16.mxu0 0
  %98 = vmatpush1.bf16.msra.mxu0 0
  %99 = vmatprep.mubr.bf16.mxu0 0
  %100 = vmatmul.mubr.bf16.gmra.mrb[0].mxu0 %v62
  %v101 = vpop.f32.mrb[0].mxu0
  %v102 = vadd.f32 %v34, %v101
  %v103 = vpop.f32.mrb[0].mxu0
  %v104 = vpop.f32.mrb[0].mxu0
  %v105 = vadd.f32 %v34, %v104
  %v106 = vpop.f32.mrb[0].mxu0
  %107 = vmatprep.mubr.bf16.mxu0 0
  %108 = vmatmul.mubr.bf16.gmra.mrb[0].mxu0 %v65
  %v109 = vpop.f32.mrb[0].mxu0
  %v110 = vadd.f32 %v34, %v109
  %v111 = vpop.f32.mrb[0].mxu0
  %v112 = vpop.f32.mrb[0].mxu0
  %v113 = vadd.f32 %v34, %v112
  %v114 = vpop.f32.mrb[0].mxu0
  %115 = vdwg.mxu0
  %vm116 = vcmask 261120
  %117 = vst.msk [vmem:[%s3] sm:$0xff] %vm116, %v102
  %118 = vst.msk [vmem:[%s3 + $0x8] sm:$0xff] %vm116, %v105
  %119 = vst.msk [vmem:[%s3 + $0x10] sm:$0xff] %vm116, %v110
  %120 = vst.msk [vmem:[%s3 + $0x18] sm:$0xff] %vm116, %v113
  // Predicated region
  $region14: #{_lambda_.10} parent=0 // pred_check
    _
  $region15: #{_lambda_.10} parent=0 // pred_check_branch
    %122 = sbr.rel (0) target = $region17
  $region16: #{_lambda_.10} parent=0 // pred_region
    _
  $region17: #{_lambda_.10} parent=0 // pred_fallthru
    _
  // Predicated region
  $region18: #{_lambda_.10} parent=0 // pred_check
    _
  $region19: #{_lambda_.10} parent=0 // pred_check_branch
    %124 = sbr.rel (0) target = $region21
  $region20: #{_lambda_.10} parent=0 // pred_region
    _
  $region21: #{_lambda_.10} parent=0 // pred_fallthru
    _

// kernel: _lambda_.9
$region0: #{_lambda_.9}
  #allocation0 [shape = 'u32[]', space=smem, size = 0x4, offset = 0x4, fixed_abs, tag = 'smem constant byte address 0x4 - core index']
  #allocation1 [shape = 'u32[144,128]{1,0:T(1,128)}', space=vmem, size = 0x12000, scoped, tag = 'internal scratch']
  %s0 = inlined_call_operand.vmem [shape: f32[4,16,32], index: 0, kind: input, shape index: {}]
  %s1 = inlined_call_operand.vmem [shape: f32[4,16,32], index: 1, kind: input, shape index: {}]
  %s2 = inlined_call_operand.vmem [shape: f32[4,16,32], index: 2, kind: input, shape index: {}]
  %s3 = inlined_call_operand.vmem [shape: f32[16,32], index: 3, kind: input, shape index: {}]
  %s4 = inlined_call_operand.vmem [shape: f32[16,32], index: 4, kind: input, shape index: {}]
  %s5 = inlined_call_operand.vmem [shape: f32[32,32], index: 5, kind: input, shape index: {}]
  %s6 = inlined_call_operand.vmem [shape: f32[4,16,32], index: 6, kind: output, shape index: {}]
  %s7 = sld [smem:[#allocation0]]
  $region57: #{_lambda_.9} parent=0
    _
  %s9 = ssub.s32 1, %s7
  %s10 = scalar_select 0, %s9, %s7
  loop: start=0, step=1, limit=6
  $region2: #{_lambda_.9} parent=0 // loop_pre_header
    _
  $region3: #{_lambda_.9} parent=0 // loop_header
    %s12 = sphi 0, %s16
    %p13 = scmp.ge.s32.totalorder %s12, 6
    %s22 = sphi 0, %s24
    %s25 = sphi 0, %s22
    %s26 = sphi 0, %s25
    %s42 = sphi 0, %s26
    %s48 = sphi 0, %s50
    %s51 = sphi 0, %s48
    %s52 = sphi 0, %s51
    %s68 = sphi 0, %s52
    %s74 = sphi 0, %s76
    %s77 = sphi 0, %s74
    %s78 = sphi 0, %s77
    %s94 = sphi 0, %s78
    %s98 = sphi 0, %s98
    %s100 = sphi 0, %s98
    %s101 = sphi 0, %s100
    %s115 = sphi 0, %s101
    %s119 = sphi 0, %s119
    %s121 = sphi 0, %s119
    %s122 = sphi 0, %s121
    %s136 = sphi 0, %s122
    %s140 = sphi 0, %s140
    %s142 = sphi 0, %s140
    %s143 = sphi 0, %s142
    %s157 = sphi 0, %s143
    %s163 = sphi 0, %s165
    %s166 = sphi 0, %s163
    %s167 = sphi 0, %s166
    %s183 = sphi 0, %s167
  $region4: #{_lambda_.9} parent=0 // loop_header_branch
    %15 = sbr.rel (%p13) target = $region8
  $region5: #{_lambda_.9} parent=0 // loop_body
    %s17 = ssub.s32 %s12, 1
    %s18 = ssub.s32 %s12, 2
    %s19 = sadd.s32 %s12, 1
    %s20 = ssub.s32 %s12, %s19
    %p21 = scmp.eq.s32.totalorder %s20, 0
    %s23 = sadd.s32 %s22, 1
    %s24 = scalar_select %p21, %s22, %s23
    %p27 = pneg %p21
    %p28 = scmp.eq.s32.totalorder %s12, 3
    %p29 = por %p27, %p28
    %p30 = scmp.ne.s32.totalorder %s22, %s25
    %p31 = scmp.eq.s32.totalorder %s12, 0
    %p32 = por %p30, %p31
    %p33 = scmp.ne.s32.totalorder %s22, %s25
    %p34 = scmp.eq.s32.totalorder %s17, 3
    %p35 = por %p33, %p34
    %p36 = scmp.ne.s32.totalorder %s25, %s26
    %p37 = scmp.eq.s32.totalorder %s17, 0
    %p38 = por %p36, %p37
    %p39 = scmp.ne.s32.totalorder %s25, %s26
    %p40 = scmp.eq.s32.totalorder %s18, 3
    %p41 = por %p39, %p40
    %p43 = scmp.ne.s32.totalorder %s26, %s42
    %p44 = scmp.eq.s32.totalorder %s18, 0
    %p45 = por %p43, %p44
    %s46 = ssub.s32 %s12, %s19
    %p47 = scmp.eq.s32.totalorder %s46, 0
    %s49 = sadd.s32 %s48, 1
    %s50 = scalar_select %p47, %s48, %s49
    %p53 = pneg %p47
    %p54 = scmp.eq.s32.totalorder %s12, 3
    %p55 = por %p53, %p54
    %p56 = scmp.ne.s32.totalorder %s48, %s51
    %p57 = scmp.eq.s32.totalorder %s12, 0
    %p58 = por %p56, %p57
    %p59 = scmp.ne.s32.totalorder %s48, %s51
    %p60 = scmp.eq.s32.totalorder %s17, 3
    %p61 = por %p59, %p60
    %p62 = scmp.ne.s32.totalorder %s51, %s52
    %p63 = scmp.eq.s32.totalorder %s17, 0
    %p64 = por %p62, %p63
    %p65 = scmp.ne.s32.totalorder %s51, %s52
    %p66 = scmp.eq.s32.totalorder %s18, 3
    %p67 = por %p65, %p66
    %p69 = scmp.ne.s32.totalorder %s52, %s68
    %p70 = scmp.eq.s32.totalorder %s18, 0
    %p71 = por %p69, %p70
    %s72 = ssub.s32 %s12, %s19
    %p73 = scmp.eq.s32.totalorder %s72, 0
    %s75 = sadd.s32 %s74, 1
    %s76 = scalar_select %p73, %s74, %s75
    %p79 = pneg %p73
    %p80 = scmp.eq.s32.totalorder %s12, 3
    %p81 = por %p79, %p80
    %p82 = scmp.ne.s32.totalorder %s74, %s77
    %p83 = scmp.eq.s32.totalorder %s12, 0
    %p84 = por %p82, %p83
    %p85 = scmp.ne.s32.totalorder %s74, %s77
    %p86 = scmp.eq.s32.totalorder %s17, 3
    %p87 = por %p85, %p86
    %p88 = scmp.ne.s32.totalorder %s77, %s78
    %p89 = scmp.eq.s32.totalorder %s17, 0
    %p90 = por %p88, %p89
    %p91 = scmp.ne.s32.totalorder %s77, %s78
    %p92 = scmp.eq.s32.totalorder %s18, 3
    %p93 = por %p91, %p92
    %p95 = scmp.ne.s32.totalorder %s78, %s94
    %p96 = scmp.eq.s32.totalorder %s18, 0
    %p97 = por %p95, %p96
    %s99 = sadd.s32 %s98, 1
    %p102 = scmp.eq.s32.totalorder %s12, 3
    %p103 = scmp.ne.s32.totalorder %s98, %s100
    %p104 = scmp.eq.s32.totalorder %s12, 0
    %p105 = por %p103, %p104
    %p106 = scmp.ne.s32.totalorder %s98, %s100
    %p107 = scmp.eq.s32.totalorder %s17, 3
    %p108 = por %p106, %p107
    %p109 = scmp.ne.s32.totalorder %s100, %s101
    %p110 = scmp.eq.s32.totalorder %s17, 0
    %p111 = por %p109, %p110
    %p112 = scmp.ne.s32.totalorder %s100, %s101
    %p113 = scmp.eq.s32.totalorder %s18, 3
    %p114 = por %p112, %p113
    %p116 = scmp.ne.s32.totalorder %s101, %s115
    %p117 = scmp.eq.s32.totalorder %s18, 0
    %p118 = por %p116, %p117
    %s120 = sadd.s32 %s119, 1
    %p123 = scmp.eq.s32.totalorder %s12, 3
    %p124 = scmp.ne.s32.totalorder %s119, %s121
    %p125 = scmp.eq.s32.totalorder %s12, 0
    %p126 = por %p124, %p125
    %p127 = scmp.ne.s32.totalorder %s119, %s121
    %p128 = scmp.eq.s32.totalorder %s17, 3
    %p129 = por %p127, %p128
    %p130 = scmp.ne.s32.totalorder %s121, %s122
    %p131 = scmp.eq.s32.totalorder %s17, 0
    %p132 = por %p130, %p131
    %p133 = scmp.ne.s32.totalorder %s121, %s122
    %p134 = scmp.eq.s32.totalorder %s18, 3
    %p135 = por %p133, %p134
    %p137 = scmp.ne.s32.totalorder %s122, %s136
    %p138 = scmp.eq.s32.totalorder %s18, 0
    %p139 = por %p137, %p138
    %s141 = sadd.s32 %s140, 1
    %p144 = scmp.eq.s32.totalorder %s12, 3
    %p145 = scmp.ne.s32.totalorder %s140, %s142
    %p146 = scmp.eq.s32.totalorder %s12, 0
    %p147 = por %p145, %p146
    %p148 = scmp.ne.s32.totalorder %s140, %s142
    %p149 = scmp.eq.s32.totalorder %s17, 3
    %p150 = por %p148, %p149
    %p151 = scmp.ne.s32.totalorder %s142, %s143
    %p152 = scmp.eq.s32.totalorder %s17, 0
    %p153 = por %p151, %p152
    %p154 = scmp.ne.s32.totalorder %s142, %s143
    %p155 = scmp.eq.s32.totalorder %s18, 3
    %p156 = por %p154, %p155
    %p158 = scmp.ne.s32.totalorder %s143, %s157
    %p159 = scmp.eq.s32.totalorder %s18, 0
    %p160 = por %p158, %p159
    %s161 = ssub.s32 %s12, %s19
    %p162 = scmp.eq.s32.totalorder %s161, 0
    %s164 = sadd.s32 %s163, 1
    %s165 = scalar_select %p162, %s163, %s164
    %p168 = pneg %p162
    %p169 = scmp.eq.s32.totalorder %s12, 3
    %p170 = por %p168, %p169
    %p171 = scmp.ne.s32.totalorder %s163, %s166
    %p172 = scmp.eq.s32.totalorder %s12, 0
    %p173 = por %p171, %p172
    %p174 = scmp.ne.s32.totalorder %s163, %s166
    %p175 = scmp.eq.s32.totalorder %s17, 3
    %p176 = por %p174, %p175
    %p177 = scmp.ne.s32.totalorder %s166, %s167
    %p178 = scmp.eq.s32.totalorder %s17, 0
    %p179 = por %p177, %p178
    %p180 = scmp.ne.s32.totalorder %s166, %s167
    %p181 = scmp.eq.s32.totalorder %s18, 3
    %p182 = por %p180, %p181
    %p184 = scmp.ne.s32.totalorder %s167, %s183
    %p185 = scmp.eq.s32.totalorder %s18, 0
    %p186 = por %p184, %p185
    %p187 = scmp.le.s32.totalorder 1, %s12
    %p188 = scmp.lt.s32.totalorder %s12, 5
    %p189 = pnand %p187, %p188
    %p190 = pneg %p189
    // Predicated region
    $region9: #{_lambda_.9} parent=5 // pred_check
      _
    $region10: #{_lambda_.9} parent=5 // pred_check_branch
      %192 = sbr.rel (%p189) target = $region12
    $region11: #{_lambda_.9} parent=5 // pred_region
      %s193 = ssub.s32 %s12, 1
      // Predicated region
      $region13: #{_lambda_.9} parent=11 // pred_check
        %p194 = pneg %p111
      $region14: #{_lambda_.9} parent=11 // pred_check_branch
        %196 = sbr.rel (%p194) target = $region16
      $region15: #{_lambda_.9} parent=11 // pred_region
        _
      $region16: #{_lambda_.9} parent=11 // pred_fallthru
        _
      // Predicated region
      $region17: #{_lambda_.9} parent=11 // pred_check
        %p197 = pneg %p132
      $region18: #{_lambda_.9} parent=11 // pred_check_branch
        %199 = sbr.rel (%p197) target = $region20
      $region19: #{_lambda_.9} parent=11 // pred_region
        _
      $region20: #{_lambda_.9} parent=11 // pred_fallthru
        _
      // Predicated region
      $region21: #{_lambda_.9} parent=11 // pred_check
        %p200 = pneg %p153
      $region22: #{_lambda_.9} parent=11 // pred_check_branch
        %202 = sbr.rel (%p200) target = $region24
      $region23: #{_lambda_.9} parent=11 // pred_region
        _
      $region24: #{_lambda_.9} parent=11 // pred_fallthru
        _
    $region12: #{_lambda_.9} parent=5 // pred_fallthru
      _
    %p203 = scmp.lt.s32.totalorder %s12, 4
    // Predicated region
    $region25: #{_lambda_.9} parent=5 // pred_check
      %p204 = pneg %p203
    $region26: #{_lambda_.9} parent=5 // pred_check_branch
      %206 = sbr.rel (%p204) target = $region28
    $region27: #{_lambda_.9} parent=5 // pred_region
      // Predicated region
      $region29: #{_lambda_.9} parent=27 // pred_check
        %p207 = pneg %p32
      $region30: #{_lambda_.9} parent=27 // pred_check_branch
        %209 = sbr.rel (%p207) target = $region32
      $region31: #{_lambda_.9} parent=27 // pred_region
        %p210 = scmp.lt.s32.totalorder %s12, 3
        %s211 = scalar_select %p210, %s12, 3
        %s212 = smul.addr %s211, 2
        %s213 = smul.addr %s212, 8
        %s214 = scalar_lea.vmem %s0, %s213
      $region32: #{_lambda_.9} parent=27 // pred_fallthru
        _
      // Predicated region
      $region33: #{_lambda_.9} parent=27 // pred_check
        %p215 = pneg %p58
      $region34: #{_lambda_.9} parent=27 // pred_check_branch
        %217 = sbr.rel (%p215) target = $region36
      $region35: #{_lambda_.9} parent=27 // pred_region
        %p218 = scmp.lt.s32.totalorder %s12, 3
        %s219 = scalar_select %p218, %s12, 3
        %s220 = smul.addr %s219, 2
        %s221 = smul.addr %s220, 8
        %s222 = scalar_lea.vmem %s1, %s221
      $region36: #{_lambda_.9} parent=27 // pred_fallthru
        _
      // Predicated region
      $region37: #{_lambda_.9} parent=27 // pred_check
        %p223 = pneg %p84
      $region38: #{_lambda_.9} parent=27 // pred_check_branch
        %225 = sbr.rel (%p223) target = $region40
      $region39: #{_lambda_.9} parent=27 // pred_region
        %p226 = scmp.lt.s32.totalorder %s12, 3
        %s227 = scalar_select %p226, %s12, 3
        %s228 = smul.addr %s227, 2
        %s229 = smul.addr %s228, 8
        %s230 = scalar_lea.vmem %s2, %s229
      $region40: #{_lambda_.9} parent=27 // pred_fallthru
        _
    $region28: #{_lambda_.9} parent=5 // pred_fallthru
      _
    %p231 = scmp.le.s32.totalorder 1, %s12
    %p232 = scmp.lt.s32.totalorder %s12, 5
    %p233 = pnand %p231, %p232
    %p234 = pneg %p233
    // Predicated region
    $region41: #{_lambda_.9} parent=5 // pred_check
      _
    $region42: #{_lambda_.9} parent=5 // pred_check_branch
      %236 = sbr.rel (%p233) target = $region44
    $region43: #{_lambda_.9} parent=5 // pred_region
      %s237 = ssub.s32 %s12, 1
      %p238 = scmp.lt.s32.totalorder %s17, 3
      %s239 = scalar_select %p238, %s17, 3
      %s240 = smul.addr %s239, 2
      %s241 = smul.addr %s240, 8
      %s242 = scalar_lea.vmem %s0, %s241
      %p243 = pneg %p38
      %p244 = pneg %p35
      %p245 = scmp.lt.s32.totalorder %s17, 3
      %s246 = scalar_select %p245, %s17, 3
      %s247 = smul.addr %s246, 2
      %s248 = smul.addr %s247, 8
      %s249 = scalar_lea.vmem %s1, %s248
      %p250 = pneg %p64
      %p251 = pneg %p61
      %p252 = scmp.lt.s32.totalorder %s17, 3
      %s253 = scalar_select %p252, %s17, 3
      %s254 = smul.addr %s253, 2
      %s255 = smul.addr %s254, 8
      %s256 = scalar_lea.vmem %s2, %s255
      %p257 = pneg %p90
      %p258 = pneg %p87
      %p259 = pneg %p111
      %p260 = pneg %p108
      %p261 = pneg %p132
      %p262 = pneg %p129
      %p263 = pneg %p153
      %p264 = pneg %p150
      %p265 = pneg %p179
      %p266 = pneg %p176
      %p267 = scmp.lt.s32.totalorder %s17, 3
      %s268 = scalar_select %p267, %s17, 3
      %s269 = smul.addr %s268, 2
      %s270 = smul.addr %s269, 8
      %s271 = scalar_lea.vmem %s6, %s270
      %p272 = scmp.lt.s32.totalorder %s17, 3
      %s273 = scalar_select %p272, %s17, 3
      %s274 = smul.addr %s273, 2
      %s275 = smul.addr %s274, 8
      %s276 = scalar_lea.vmem %s0, %s275
      %p277 = scmp.lt.s32.totalorder %s17, 3
      %s278 = scalar_select %p277, %s17, 3
      %s279 = smul.addr %s278, 2
      %s280 = smul.addr %s279, 8
      %s281 = scalar_lea.vmem %s1, %s280
      %p282 = scmp.lt.s32.totalorder %s17, 3
      %s283 = scalar_select %p282, %s17, 3
      %s284 = smul.addr %s283, 2
      %s285 = smul.addr %s284, 8
      %s286 = scalar_lea.vmem %s2, %s285
      %p287 = scmp.lt.s32.totalorder %s17, 3
      %s288 = scalar_select %p287, %s17, 3
      %s289 = smul.addr %s288, 2
      %s290 = smul.addr %s289, 8
      %s291 = scalar_lea.vmem %s6, %s290
      %v292 = vld [vmem:[%s276] sm:$0xff]
      %v293 = vld [vmem:[%s276 + $0x8] sm:$0xff]
      %v294 = vld [vmem:[%s281] sm:$0xff]
      %v295 = vld [vmem:[%s281 + $0x8] sm:$0xff]
      %v296 = vld [vmem:[%s286] sm:$0xff]
      %v297 = vld [vmem:[%s286 + $0x8] sm:$0xff]
      %v298 = vld [vmem:[%s3] sm:$0xff]
      %v299 = vld [vmem:[%s3 + $0x8] sm:$0xff]
      %v300 = vld [vmem:[%s4] sm:$0xff]
      %v301 = vld [vmem:[%s4 + $0x8] sm:$0xff]
      %v302 = vld [vmem:[%s5] sm:$0xff]
      %v303 = vld [vmem:[%s5 + $0x8] sm:$0xff]
      %v304 = vld [vmem:[%s5 + $0x10] sm:$0xff]
      %v305 = vld [vmem:[%s5 + $0x18] sm:$0xff]
      %v306 = vmul.f32 %v292, %v298
      %v307 = vmul.f32 %v293, %v299
      %vm308 = vcmask 261120
      %v310 = vsel %vm308, %v292, 0
      %v313 = vsel %vm308, %v293, 0
      %315 = vmatprep.subr.mxu0 0.0
      %316 = vmatpush1.msra.mxu0 %v302
      %317 = vmatprep.subr.mxu0 0.0
      %318 = vmatpush1.msra.mxu0 %v303
      %319 = vmatprep.subr.mxu0 0.0
      %320 = vmatpush1.msra.mxu0 %v304
      %321 = vmatprep.subr.mxu0 0.0
      %322 = vmatpush1.msra.mxu0 %v305
      %323 = vmatprep.subr.mxu0 0.0
      %324 = vmatpush1.msra.mxu0 0.0
      %325 = vmatprep.subr.mxu0 0.0
      %326 = vmatpush1.msra.mxu0 0.0
      %327 = vmatprep.subr.mxu0 0.0
      %328 = vmatpush1.msra.mxu0 0.0
      %329 = vmatprep.subr.mxu0 0.0
      %330 = vmatpush1.msra.mxu0 0.0
      %331 = vmatprep.subr.mxu0 0.0
      %332 = vmatpush1.msra.mxu0 0.0
      %333 = vmatprep.subr.mxu0 0.0
      %334 = vmatpush1.msra.mxu0 0.0
      %335 = vmatprep.subr.mxu0 0.0
      %336 = vmatpush1.msra.mxu0 0.0
      %337 = vmatprep.subr.mxu0 0.0
      %338 = vmatpush1.msra.mxu0 0.0
      %339 = vmatprep.subr.mxu0 0.0
      %340 = vmatpush1.msra.mxu0 0.0
      %341 = vmatprep.subr.mxu0 0.0
      %342 = vmatpush1.msra.mxu0 0.0
      %343 = vmatprep.subr.mxu0 0.0
      %344 = vmatpush1.msra.mxu0 0.0
      %345 = vmatprep.subr.mxu0 0.0
      %346 = vmatpush1.msra.mxu0 0.0
      %347 = vmatprep.subr.mxu0 0.0
      %348 = vmatpush1.msra.mxu0 0.0
      %349 = vmatprep.subr.mxu0 0.0
      %350 = vmatpush1.msra.mxu0 0.0
      %351 = vmatprep.subr.mxu0 0.0
      %352 = vmatpush1.msra.mxu0 0.0
      %353 = vmatprep.subr.mxu0 0.0
      %354 = vmatpush1.msra.mxu0 0.0
      %355 = vmatprep.subr.mxu0 0.0
      %356 = vmatpush1.msra.mxu0 0.0
      %357 = vmatprep.subr.mxu0 0.0
      %358 = vmatpush1.msra.mxu0 0.0
      %359 = vmatprep.subr.mxu0 0.0
      %360 = vmatpush1.msra.mxu0 0.0
      %361 = vmatprep.subr.mxu0 0.0
      %362 = vmatpush1.msra.mxu0 0.0
      %363 = vmatprep.subr.mxu0 0.0
      %364 = vmatpush1.msra.mxu0 0.0
      %365 = vmatprep.subr.mxu0 0.0
      %366 = vmatpush1.msra.mxu0 0.0
      %367 = vmatprep.subr.mxu0 0.0
      %368 = vmatpush1.msra.mxu0 0.0
      %369 = vmatprep.subr.mxu0 0.0
      %370 = vmatpush1.msra.mxu0 0.0
      %371 = vmatprep.subr.mxu0 0.0
      %372 = vmatpush1.msra.mxu0 0.0
      %373 = vmatprep.subr.mxu0 0.0
      %374 = vmatpush1.msra.mxu0 0.0
      %375 = vmatprep.subr.mxu0 0.0
      %376 = vmatpush1.msra.mxu0 0.0
      %377 = vmatprep.subr.mxu0 0.0
      %378 = vmatpush1.msra.mxu0 0.0
      %379 = vmatprep.mubr.f32.mxu0 0.0
      %380 = vmatmul.mubr.f32.gmra.mrb[0].mxu0 %v310
      %v381 = vpop.f32.mrb[0].mxu0
      %v382 = vadd.f32 0.0, %v381
      %v383 = vpop.f32.mrb[0].mxu0
      %384 = vmatprep.mubr.f32.mxu0 0.0
      %385 = vmatmul.mubr.f32.gmra.mrb[0].mxu0 %v313
      %v386 = vpop.f32.mrb[0].mxu0
      %v387 = vadd.f32 0.0, %v386
      %v388 = vpop.f32.mrb[0].mxu0
      %389 = vdwg.mxu0
      %v390 = vmul.f32 %v382, %v300
      %v391 = vmul.f32 %v387, %v301
      %v392 = vadd.f32 %v306, %v390
      %v393 = vadd.f32 %v307, %v391
      %v394 = vmul.f32 %v294, %v298
      %v395 = vmul.f32 %v295, %v299
      %v397 = vsel %vm308, %v294, 0
      %v400 = vsel %vm308, %v295, 0
      %402 = vmatprep.subr.mxu0 0.0
      %403 = vmatpush1.msra.mxu0 %v302
      %404 = vmatprep.subr.mxu0 0.0
      %405 = vmatpush1.msra.mxu0 %v303
      %406 = vmatprep.subr.mxu0 0.0
      %407 = vmatpush1.msra.mxu0 %v304
      %408 = vmatprep.subr.mxu0 0.0
      %409 = vmatpush1.msra.mxu0 %v305
      %410 = vmatprep.subr.mxu0 0.0
      %411 = vmatpush1.msra.mxu0 0.0
      %412 = vmatprep.subr.mxu0 0.0
      %413 = vmatpush1.msra.mxu0 0.0
      %414 = vmatprep.subr.mxu0 0.0
      %415 = vmatpush1.msra.mxu0 0.0
      %416 = vmatprep.subr.mxu0 0.0
      %417 = vmatpush1.msra.mxu0 0.0
      %418 = vmatprep.subr.mxu0 0.0
      %419 = vmatpush1.msra.mxu0 0.0
      %420 = vmatprep.subr.mxu0 0.0
      %421 = vmatpush1.msra.mxu0 0.0
      %422 = vmatprep.subr.mxu0 0.0
      %423 = vmatpush1.msra.mxu0 0.0
      %424 = vmatprep.subr.mxu0 0.0
      %425 = vmatpush1.msra.mxu0 0.0
      %426 = vmatprep.subr.mxu0 0.0
      %427 = vmatpush1.msra.mxu0 0.0
      %428 = vmatprep.subr.mxu0 0.0
      %429 = vmatpush1.msra.mxu0 0.0
      %430 = vmatprep.subr.mxu0 0.0
      %431 = vmatpush1.msra.mxu0 0.0
      %432 = vmatprep.subr.mxu0 0.0
      %433 = vmatpush1.msra.mxu0 0.0
      %434 = vmatprep.subr.mxu0 0.0
      %435 = vmatpush1.msra.mxu0 0.0
      %436 = vmatprep.subr.mxu0 0.0
      %437 = vmatpush1.msra.mxu0 0.0
      %438 = vmatprep.subr.mxu0 0.0
      %439 = vmatpush1.msra.mxu0 0.0
      %440 = vmatprep.subr.mxu0 0.0
      %441 = vmatpush1.msra.mxu0 0.0
      %442 = vmatprep.subr.mxu0 0.0
      %443 = vmatpush1.msra.mxu0 0.0
      %444 = vmatprep.subr.mxu0 0.0
      %445 = vmatpush1.msra.mxu0 0.0
      %446 = vmatprep.subr.mxu0 0.0
      %447 = vmatpush1.msra.mxu0 0.0
      %448 = vmatprep.subr.mxu0 0.0
      %449 = vmatpush1.msra.mxu0 0.0
      %450 = vmatprep.subr.mxu0 0.0
      %451 = vmatpush1.msra.mxu0 0.0
      %452 = vmatprep.subr.mxu0 0.0
      %453 = vmatpush1.msra.mxu0 0.0
      %454 = vmatprep.subr.mxu0 0.0
      %455 = vmatpush1.msra.mxu0 0.0
      %456 = vmatprep.subr.mxu0 0.0
      %457 = vmatpush1.msra.mxu0 0.0
      %458 = vmatprep.subr.mxu0 0.0
      %459 = vmatpush1.msra.mxu0 0.0
      %460 = vmatprep.subr.mxu0 0.0
      %461 = vmatpush1.msra.mxu0 0.0
      %462 = vmatprep.subr.mxu0 0.0
      %463 = vmatpush1.msra.mxu0 0.0
      %464 = vmatprep.subr.mxu0 0.0
      %465 = vmatpush1.msra.mxu0 0.0
      %466 = vmatprep.mubr.f32.mxu0 0.0
      %467 = vmatmul.mubr.f32.gmra.mrb[0].mxu0 %v397
      %v468 = vpop.f32.mrb[0].mxu0
      %v469 = vadd.f32 0.0, %v468
      %v470 = vpop.f32.mrb[0].mxu0
      %471 = vmatprep.mubr.f32.mxu0 0.0
      %472 = vmatmul.mubr.f32.gmra.mrb[0].mxu0 %v400
      %v473 = vpop.f32.mrb[0].mxu0
      %v474 = vadd.f32 0.0, %v473
      %v475 = vpop.f32.mrb[0].mxu0
      %476 = vdwg.mxu0
      %v477 = vmul.f32 %v469, %v300
      %v478 = vmul.f32 %v474, %v301
      %v479 = vadd.f32 %v394, %v477
      %v480 = vadd.f32 %v395, %v478
      %v482 = vsel %vm308, %v392, 0
      %v485 = vsel %vm308, %v393, 0
      %v488 = vsel %vm308, %v479, 0
      %v491 = vsel %vm308, %v480, 0
      %493 = vmatprep.subr.mxu0 0.0
      %494 = vmatpush1.xpose.msra.mxu0 %v488
      %495 = vmatprep.subr.mxu0 0.0
      %496 = vmatpush1.xpose.msra.mxu0 %v491
      %497 = vmatprep.subr.mxu0 0.0
      %498 = vmatpush1.xpose.msra.mxu0 0.0
      %499 = vmatprep.subr.mxu0 0.0
      %500 = vmatpush1.xpose.msra.mxu0 0.0
      %501 = vmatprep.subr.mxu0 0.0
      %502 = vmatpush1.xpose.msra.mxu0 0.0
      %503 = vmatprep.subr.mxu0 0.0
      %504 = vmatpush1.xpose.msra.mxu0 0.0
      %505 = vmatprep.subr.mxu0 0.0
      %506 = vmatpush1.xpose.msra.mxu0 0.0
      %507 = vmatprep.subr.mxu0 0.0
      %508 = vmatpush1.xpose.msra.mxu0 0.0
      %509 = vmatprep.subr.mxu0 0.0
      %510 = vmatpush1.xpose.msra.mxu0 0.0
      %511 = vmatprep.subr.mxu0 0.0
      %512 = vmatpush1.xpose.msra.mxu0 0.0
      %513 = vmatprep.subr.mxu0 0.0
      %514 = vmatpush1.xpose.msra.mxu0 0.0
      %515 = vmatprep.subr.mxu0 0.0
      %516 = vmatpush1.xpose.msra.mxu0 0.0
      %517 = vmatprep.subr.mxu0 0.0
      %518 = vmatpush1.xpose.msra.mxu0 0.0
      %519 = vmatprep.subr.mxu0 0.0
      %520 = vmatpush1.xpose.msra.mxu0 0.0
      %521 = vmatprep.subr.mxu0 0.0
      %522 = vmatpush1.xpose.msra.mxu0 0.0
      %523 = vmatprep.subr.mxu0 0.0
      %524 = vmatpush1.xpose.msra.mxu0 0.0
      %525 = vmatprep.subr.mxu0 0.0
      %526 = vmatpush1.xpose.msra.mxu0 0.0
      %527 = vmatprep.subr.mxu0 0.0
      %528 = vmatpush1.xpose.msra.mxu0 0.0
      %529 = vmatprep.subr.mxu0 0.0
      %530 = vmatpush1.xpose.msra.mxu0 0.0
      %531 = vmatprep.subr.mxu0 0.0
      %532 = vmatpush1.xpose.msra.mxu0 0.0
      %533 = vmatprep.subr.mxu0 0.0
      %534 = vmatpush1.xpose.msra.mxu0 0.0
      %535 = vmatprep.subr.mxu0 0.0
      %536 = vmatpush1.xpose.msra.mxu0 0.0
      %537 = vmatprep.subr.mxu0 0.0
      %538 = vmatpush1.xpose.msra.mxu0 0.0
      %539 = vmatprep.subr.mxu0 0.0
      %540 = vmatpush1.xpose.msra.mxu0 0.0
      %541 = vmatprep.subr.mxu0 0.0
      %542 = vmatpush1.xpose.msra.mxu0 0.0
      %543 = vmatprep.subr.mxu0 0.0
      %544 = vmatpush1.xpose.msra.mxu0 0.0
      %545 = vmatprep.subr.mxu0 0.0
      %546 = vmatpush1.xpose.msra.mxu0 0.0
      %547 = vmatprep.subr.mxu0 0.0
      %548 = vmatpush1.xpose.msra.mxu0 0.0
      %549 = vmatprep.subr.mxu0 0.0
      %550 = vmatpush1.xpose.msra.mxu0 0.0
      %551 = vmatprep.subr.mxu0 0.0
      %552 = vmatpush1.xpose.msra.mxu0 0.0
      %553 = vmatprep.subr.mxu0 0.0
      %554 = vmatpush1.xpose.msra.mxu0 0.0
      %555 = vmatprep.subr.mxu0 0.0
      %556 = vmatpush1.xpose.msra.mxu0 0.0
      %557 = vmatprep.mubr.f32.mxu0 0.0
      %558 = vmatmul.mubr.f32.gmra.mrb[0].mxu0 %v482
      %v559 = vpop.f32.mrb[0].mxu0
      %v560 = vadd.f32 0.0, %v559
      %v561 = vpop.f32.mrb[0].mxu0
      %562 = vmatprep.mubr.f32.mxu0 0.0
      %563 = vmatmul.mubr.f32.gmra.mrb[0].mxu0 %v485
      %v564 = vpop.f32.mrb[0].mxu0
      %v565 = vadd.f32 0.0, %v564
      %v566 = vpop.f32.mrb[0].mxu0
      %567 = vdwg.mxu0
      %v568 = vmul.f32 %v560, 0.17677669
      %v569 = vmul.f32 %v565, 0.17677669
      %v570 = vlaneseq
      %v571 = vshrl.u32 %v570, 7
      %v572 = vadd.s32 %v571, 8
      %v573 = vlaneseq
      %v574 = vand.u32 %v573, 127
      %vm575 = vcmp.le.s32.totalorder %v574, %v571
      %vm576 = vcmp.le.s32.totalorder %v574, %v572
      %v577 = vsel %vm575, %v568, -1e+30
      %v578 = vsel %vm576, %v569, -1e+30
      %vm579 = vcmask 130048
      %v580 = vsel %vm579, %v577, -inf
      %581 = vmax.xlane.f32.xlu0 %v580
      %v582 = vpop.xlane.xlu0 %581
      %v583 = vsel %vm579, %v578, -inf
      %584 = vmax.xlane.f32.xlu0 %v583
      %v585 = vpop.xlane.xlu0 %584
      %v586 = vsub.f32 %v577, %v582
      %v587 = vsub.f32 %v578, %v585
      %v588 = vmul.f32 %v586, 1.442695
      %v589 = vpow.pop %v588
      %v590 = vmul.f32 %v587, 1.442695
      %v591 = vpow.pop %v590
      %v592 = vsel %vm579, %v589, 0.0
      %593 = vadd.xlane.f32.xlu0 %v592
      %v594 = vpop.xlane.xlu0 %593
      %v595 = vsel %vm579, %v591, 0.0
      %596 = vadd.xlane.f32.xlu0 %v595
      %v597 = vpop.xlane.xlu0 %596
      %v598 = vrcp.pop %v594
      %v599 = vmul.f32 %v589, %v598
      %v600 = vrcp.pop %v597
      %v601 = vmul.f32 %v591, %v600
      %v603 = vsel %vm579, %v599, 0
      %v606 = vsel %vm579, %v601, 0
      %608 = vmatprep.subr.mxu0 0.0
      %609 = vmatpush1.msra.mxu0 %v296
      %610 = vmatprep.subr.mxu0 0.0
      %611 = vmatpush1.msra.mxu0 %v297
      %612 = vmatprep.subr.mxu0 0.0
      %613 = vmatpush1.msra.mxu0 0.0
      %614 = vmatprep.subr.mxu0 0.0
      %615 = vmatpush1.msra.mxu0 0.0
      %616 = vmatprep.subr.mxu0 0.0
      %617 = vmatpush1.msra.mxu0 0.0
      %618 = vmatprep.subr.mxu0 0.0
      %619 = vmatpush1.msra.mxu0 0.0
      %620 = vmatprep.subr.mxu0 0.0
      %621 = vmatpush1.msra.mxu0 0.0
      %622 = vmatprep.subr.mxu0 0.0
      %623 = vmatpush1.msra.mxu0 0.0
      %624 = vmatprep.subr.mxu0 0.0
      %625 = vmatpush1.msra.mxu0 0.0
      %626 = vmatprep.subr.mxu0 0.0
      %627 = vmatpush1.msra.mxu0 0.0
      %628 = vmatprep.subr.mxu0 0.0
      %629 = vmatpush1.msra.mxu0 0.0
      %630 = vmatprep.subr.mxu0 0.0
      %631 = vmatpush1.msra.mxu0 0.0
      %632 = vmatprep.subr.mxu0 0.0
      %633 = vmatpush1.msra.mxu0 0.0
      %634 = vmatprep.subr.mxu0 0.0
      %635 = vmatpush1.msra.mxu0 0.0
      %636 = vmatprep.subr.mxu0 0.0
      %637 = vmatpush1.msra.mxu0 0.0
      %638 = vmatprep.subr.mxu0 0.0
      %639 = vmatpush1.msra.mxu0 0.0
      %640 = vmatprep.subr.mxu0 0.0
      %641 = vmatpush1.msra.mxu0 0.0
      %642 = vmatprep.subr.mxu0 0.0
      %643 = vmatpush1.msra.mxu0 0.0
      %644 = vmatprep.subr.mxu0 0.0
      %645 = vmatpush1.msra.mxu0 0.0
      %646 = vmatprep.subr.mxu0 0.0
      %647 = vmatpush1.msra.mxu0 0.0
      %648 = vmatprep.subr.mxu0 0.0
      %649 = vmatpush1.msra.mxu0 0.0
      %650 = vmatprep.subr.mxu0 0.0
      %651 = vmatpush1.msra.mxu0 0.0
      %652 = vmatprep.subr.mxu0 0.0
      %653 = vmatpush1.msra.mxu0 0.0
      %654 = vmatprep.subr.mxu0 0.0
      %655 = vmatpush1.msra.mxu0 0.0
      %656 = vmatprep.subr.mxu0 0.0
      %657 = vmatpush1.msra.mxu0 0.0
      %658 = vmatprep.subr.mxu0 0.0
      %659 = vmatpush1.msra.mxu0 0.0
      %660 = vmatprep.subr.mxu0 0.0
      %661 = vmatpush1.msra.mxu0 0.0
      %662 = vmatprep.subr.mxu0 0.0
      %663 = vmatpush1.msra.mxu0 0.0
      %664 = vmatprep.subr.mxu0 0.0
      %665 = vmatpush1.msra.mxu0 0.0
      %666 = vmatprep.subr.mxu0 0.0
      %667 = vmatpush1.msra.mxu0 0.0
      %668 = vmatprep.subr.mxu0 0.0
      %669 = vmatpush1.msra.mxu0 0.0
      %670 = vmatprep.subr.mxu0 0.0
      %671 = vmatpush1.msra.mxu0 0.0
      %672 = vmatprep.mubr.f32.mxu0 0.0
      %673 = vmatmul.mubr.f32.gmra.mrb[0].mxu0 %v603
      %v674 = vpop.f32.mrb[0].mxu0
      %v675 = vadd.f32 0.0, %v674
      %v676 = vpop.f32.mrb[0].mxu0
      %677 = vmatprep.mubr.f32.mxu0 0.0
      %678 = vmatmul.mubr.f32.gmra.mrb[0].mxu0 %v606
      %v679 = vpop.f32.mrb[0].mxu0
      %v680 = vadd.f32 0.0, %v679
      %v681 = vpop.f32.mrb[0].mxu0
      %682 = vdwg.mxu0
      %683 = vst.msk [vmem:[%s291] sm:$0xff] %vm308, %v675
      %684 = vst.msk [vmem:[%s291 + $0x8] sm:$0xff] %vm308, %v680
      %p685 = scmp.lt.s32.totalorder %s17, 3
      %s686 = scalar_select %p685, %s17, 3
      %s687 = smul.addr %s686, 2
      %s688 = smul.addr %s687, 8
      %s689 = scalar_lea.vmem %s6, %s688
      // Predicated region
      $region45: #{_lambda_.9} parent=43 // pred_check
        %p690 = pneg %p176
      $region46: #{_lambda_.9} parent=43 // pred_check_branch
        %692 = sbr.rel (%p690) target = $region48
      $region47: #{_lambda_.9} parent=43 // pred_region
        _
      $region48: #{_lambda_.9} parent=43 // pred_fallthru
        _
    $region44: #{_lambda_.9} parent=5 // pred_fallthru
      _
    %p693 = scmp.le.s32.totalorder 2, %s12
    // Predicated region
    $region49: #{_lambda_.9} parent=5 // pred_check
      %p694 = pneg %p693
    $region50: #{_lambda_.9} parent=5 // pred_check_branch
      %696 = sbr.rel (%p694) target = $region52
    $region51: #{_lambda_.9} parent=5 // pred_region
      %s697 = ssub.s32 %s12, 2
      // Predicated region
      $region53: #{_lambda_.9} parent=51 // pred_check
        %p698 = pneg %p182
      $region54: #{_lambda_.9} parent=51 // pred_check_branch
        %700 = sbr.rel (%p698) target = $region56
      $region55: #{_lambda_.9} parent=51 // pred_region
        %p701 = scmp.lt.s32.totalorder %s18, 3
        %s702 = scalar_select %p701, %s18, 3
        %s703 = smul.addr %s702, 2
        %s704 = smul.addr %s703, 8
        %s705 = scalar_lea.vmem %s6, %s704
      $region56: #{_lambda_.9} parent=51 // pred_fallthru
        _
    $region52: #{_lambda_.9} parent=5 // pred_fallthru
      _
  $region6: #{_lambda_.9} parent=0 // loop_footer
    %s16 = sadd.s32 1, %s12
  $region7: #{_lambda_.9} parent=0 // loop_footer_branch
    %11 = sbr.rel target = $region3
  $region8: #{_lambda_.9} parent=0 // loop_exit
    _

// kernel: _lambda_.11
$region0: #{_lambda_.11}
  #allocation0 [shape = 'u32[]', space=smem, size = 0x4, offset = 0x4, fixed_abs, tag = 'smem constant byte address 0x4 - core index']
  #allocation1 [shape = 'u32[144,128]{1,0:T(1,128)}', space=vmem, size = 0x12000, scoped, tag = 'internal scratch']
  %s0 = inlined_call_operand.vmem [shape: f32[2,16,32], index: 0, kind: input, shape index: {}]
  %s1 = inlined_call_operand.vmem [shape: f32[16,32], index: 1, kind: input, shape index: {}]
  %s2 = inlined_call_operand.vmem [shape: f32[2,16,32], index: 2, kind: output, shape index: {}]
  %s3 = sld [smem:[#allocation0]]
  $region41: #{_lambda_.11} parent=0
    _
  %s5 = ssub.s32 1, %s3
  %s6 = scalar_select 0, %s5, %s3
  loop: start=0, step=1, limit=4
  $region2: #{_lambda_.11} parent=0 // loop_pre_header
    _
  $region3: #{_lambda_.11} parent=0 // loop_header
    %s8 = sphi 0, %s12
    %p9 = scmp.ge.s32.totalorder %s8, 4
    %s18 = sphi 0, %s20
    %s21 = sphi 0, %s18
    %s22 = sphi 0, %s21
    %s38 = sphi 0, %s22
    %s42 = sphi 0, %s42
    %s44 = sphi 0, %s42
    %s45 = sphi 0, %s44
    %s59 = sphi 0, %s45
    %s65 = sphi 0, %s67
    %s68 = sphi 0, %s65
    %s69 = sphi 0, %s68
    %s85 = sphi 0, %s69
  $region4: #{_lambda_.11} parent=0 // loop_header_branch
    %11 = sbr.rel (%p9) target = $region8
  $region5: #{_lambda_.11} parent=0 // loop_body
    %s13 = ssub.s32 %s8, 1
    %s14 = ssub.s32 %s8, 2
    %s15 = sadd.s32 %s8, 1
    %s16 = ssub.s32 %s8, %s15
    %p17 = scmp.eq.s32.totalorder %s16, 0
    %s19 = sadd.s32 %s18, 1
    %s20 = scalar_select %p17, %s18, %s19
    %p23 = pneg %p17
    %p24 = scmp.eq.s32.totalorder %s8, 1
    %p25 = por %p23, %p24
    %p26 = scmp.ne.s32.totalorder %s18, %s21
    %p27 = scmp.eq.s32.totalorder %s8, 0
    %p28 = por %p26, %p27
    %p29 = scmp.ne.s32.totalorder %s18, %s21
    %p30 = scmp.eq.s32.totalorder %s13, 1
    %p31 = por %p29, %p30
    %p32 = scmp.ne.s32.totalorder %s21, %s22
    %p33 = scmp.eq.s32.totalorder %s13, 0
    %p34 = por %p32, %p33
    %p35 = scmp.ne.s32.totalorder %s21, %s22
    %p36 = scmp.eq.s32.totalorder %s14, 1
    %p37 = por %p35, %p36
    %p39 = scmp.ne.s32.totalorder %s22, %s38
    %p40 = scmp.eq.s32.totalorder %s14, 0
    %p41 = por %p39, %p40
    %s43 = sadd.s32 %s42, 1
    %p46 = scmp.eq.s32.totalorder %s8, 1
    %p47 = scmp.ne.s32.totalorder %s42, %s44
    %p48 = scmp.eq.s32.totalorder %s8, 0
    %p49 = por %p47, %p48
    %p50 = scmp.ne.s32.totalorder %s42, %s44
    %p51 = scmp.eq.s32.totalorder %s13, 1
    %p52 = por %p50, %p51
    %p53 = scmp.ne.s32.totalorder %s44, %s45
    %p54 = scmp.eq.s32.totalorder %s13, 0
    %p55 = por %p53, %p54
    %p56 = scmp.ne.s32.totalorder %s44, %s45
    %p57 = scmp.eq.s32.totalorder %s14, 1
    %p58 = por %p56, %p57
    %p60 = scmp.ne.s32.totalorder %s45, %s59
    %p61 = scmp.eq.s32.totalorder %s14, 0
    %p62 = por %p60, %p61
    %s63 = ssub.s32 %s8, %s15
    %p64 = scmp.eq.s32.totalorder %s63, 0
    %s66 = sadd.s32 %s65, 1
    %s67 = scalar_select %p64, %s65, %s66
    %p70 = pneg %p64
    %p71 = scmp.eq.s32.totalorder %s8, 1
    %p72 = por %p70, %p71
    %p73 = scmp.ne.s32.totalorder %s65, %s68
    %p74 = scmp.eq.s32.totalorder %s8, 0
    %p75 = por %p73, %p74
    %p76 = scmp.ne.s32.totalorder %s65, %s68
    %p77 = scmp.eq.s32.totalorder %s13, 1
    %p78 = por %p76, %p77
    %p79 = scmp.ne.s32.totalorder %s68, %s69
    %p80 = scmp.eq.s32.totalorder %s13, 0
    %p81 = por %p79, %p80
    %p82 = scmp.ne.s32.totalorder %s68, %s69
    %p83 = scmp.eq.s32.totalorder %s14, 1
    %p84 = por %p82, %p83
    %p86 = scmp.ne.s32.totalorder %s69, %s85
    %p87 = scmp.eq.s32.totalorder %s14, 0
    %p88 = por %p86, %p87
    %p89 = scmp.le.s32.totalorder 1, %s8
    %p90 = scmp.lt.s32.totalorder %s8, 3
    %p91 = pnand %p89, %p90
    %p92 = pneg %p91
    // Predicated region
    $region9: #{_lambda_.11} parent=5 // pred_check
      _
    $region10: #{_lambda_.11} parent=5 // pred_check_branch
      %94 = sbr.rel (%p91) target = $region12
    $region11: #{_lambda_.11} parent=5 // pred_region
      %s95 = ssub.s32 %s8, 1
      // Predicated region
      $region13: #{_lambda_.11} parent=11 // pred_check
        %p96 = pneg %p55
      $region14: #{_lambda_.11} parent=11 // pred_check_branch
        %98 = sbr.rel (%p96) target = $region16
      $region15: #{_lambda_.11} parent=11 // pred_region
        _
      $region16: #{_lambda_.11} parent=11 // pred_fallthru
        _
    $region12: #{_lambda_.11} parent=5 // pred_fallthru
      _
    %p99 = scmp.lt.s32.totalorder %s8, 2
    // Predicated region
    $region17: #{_lambda_.11} parent=5 // pred_check
      %p100 = pneg %p99
    $region18: #{_lambda_.11} parent=5 // pred_check_branch
      %102 = sbr.rel (%p100) target = $region20
    $region19: #{_lambda_.11} parent=5 // pred_region
      // Predicated region
      $region21: #{_lambda_.11} parent=19 // pred_check
        %p103 = pneg %p28
      $region22: #{_lambda_.11} parent=19 // pred_check_branch
        %105 = sbr.rel (%p103) target = $region24
      $region23: #{_lambda_.11} parent=19 // pred_region
        %p106 = scmp.lt.s32.totalorder %s8, 1
        %s107 = scalar_select %p106, %s8, 1
        %s108 = smul.addr %s107, 2
        %s109 = smul.addr %s108, 8
        %s110 = scalar_lea.vmem %s0, %s109
      $region24: #{_lambda_.11} parent=19 // pred_fallthru
        _
    $region20: #{_lambda_.11} parent=5 // pred_fallthru
      _
    %p111 = scmp.le.s32.totalorder 1, %s8
    %p112 = scmp.lt.s32.totalorder %s8, 3
    %p113 = pnand %p111, %p112
    %p114 = pneg %p113
    // Predicated region
    $region25: #{_lambda_.11} parent=5 // pred_check
      _
    $region26: #{_lambda_.11} parent=5 // pred_check_branch
      %116 = sbr.rel (%p113) target = $region28
    $region27: #{_lambda_.11} parent=5 // pred_region
      %s117 = ssub.s32 %s8, 1
      %p118 = scmp.lt.s32.totalorder %s13, 1
      %s119 = scalar_select %p118, %s13, 1
      %s120 = smul.addr %s119, 2
      %s121 = smul.addr %s120, 8
      %s122 = scalar_lea.vmem %s0, %s121
      %p123 = pneg %p34
      %p124 = pneg %p31
      %p125 = pneg %p55
      %p126 = pneg %p52
      %p127 = pneg %p81
      %p128 = pneg %p78
      %p129 = scmp.lt.s32.totalorder %s13, 1
      %s130 = scalar_select %p129, %s13, 1
      %s131 = smul.addr %s130, 2
      %s132 = smul.addr %s131, 8
      %s133 = scalar_lea.vmem %s2, %s132
      %p134 = scmp.lt.s32.totalorder %s13, 1
      %s135 = scalar_select %p134, %s13, 1
      %s136 = smul.addr %s135, 2
      %s137 = smul.addr %s136, 8
      %s138 = scalar_lea.vmem %s0, %s137
      %p139 = scmp.lt.s32.totalorder %s13, 1
      %s140 = scalar_select %p139, %s13, 1
      %s141 = smul.addr %s140, 2
      %s142 = smul.addr %s141, 8
      %s143 = scalar_lea.vmem %s2, %s142
      %v144 = vld [vmem:[%s138] sm:$0xff]
      %v145 = vld [vmem:[%s138 + $0x8] sm:$0xff]
      %v146 = vmul.f32 %v144, %v144
      %v147 = vmul.f32 %v145, %v145
      %vm148 = vcmask 261120
      %v149 = vsel %vm148, %v146, 0.0
      %v150 = vsel %vm148, %v147, 0.0
      %v151 = vadd.f32 %v149, %v150
      %152 = vadd.xlane.f32.xlu0 %v151
      %v153 = vpop.xlane.xlu0 %152
      %v154 = vrot.slane %v153, 4
      %v155 = vadd.f32 %v153, %v154
      %v156 = vrot.slane %v155, 2
      %v157 = vadd.f32 %v155, %v156
      %v158 = vrot.slane %v157, 1
      %v159 = vadd.f32 %v157, %v158
      %s160 = vtos %v159
      %v161 = vstv %s160
      %v162 = vrsqrt.pop %v161
      %v163 = vmul.f32 %v161, %v162
      %vm164 = vcmp.eq.f32.partialorder %v161, inf
      %v165 = vsel %vm164, %v161, %v163
      %vm166 = vcmp.eq.f32.partialorder %v161, 0.0
      %v167 = vand.u32 %v161, 2147483648
      %v168 = vsel %vm166, %v167, %v165
      %s169 = vtos %v168
      %s170 = smul.f32 %s169, 0.044194173
      %v171 = vld [vmem:[%s1] sm:$0xff]
      %v172 = vld [vmem:[%s1 + $0x8] sm:$0xff]
      %v173 = vstv %s170
      %v174 = vrcp.pop %v173
      %v175 = vmul.f32 %v144, %v174
      %v176 = vmul.f32 %v145, %v174
      %v177 = vmul.f32 %v171, %v175
      %v178 = vmul.f32 %v172, %v176
      %179 = vst.msk [vmem:[%s143] sm:$0xff] %vm148, %v177
      %180 = vst.msk [vmem:[%s143 + $0x8] sm:$0xff] %vm148, %v178
      %p181 = scmp.lt.s32.totalorder %s13, 1
      %s182 = scalar_select %p181, %s13, 1
      %s183 = smul.addr %s182, 2
      %s184 = smul.addr %s183, 8
      %s185 = scalar_lea.vmem %s2, %s184
      // Predicated region
      $region29: #{_lambda_.11} parent=27 // pred_check
        %p186 = pneg %p78
      $region30: #{_lambda_.11} parent=27 // pred_check_branch
        %188 = sbr.rel (%p186) target = $region32
      $region31: #{_lambda_.11} parent=27 // pred_region
        _
      $region32: #{_lambda_.11} parent=27 // pred_fallthru
        _
    $region28: #{_lambda_.11} parent=5 // pred_fallthru
      _
    %p189 = scmp.le.s32.totalorder 2, %s8
    // Predicated region
    $region33: #{_lambda_.11} parent=5 // pred_check
      %p190 = pneg %p189
    $region34: #{_lambda_.11} parent=5 // pred_check_branch
      %192 = sbr.rel (%p190) target = $region36
    $region35: #{_lambda_.11} parent=5 // pred_region
      %s193 = ssub.s32 %s8, 2
      // Predicated region
      $region37: #{_lambda_.11} parent=35 // pred_check
        %p194 = pneg %p84
      $region38: #{_lambda_.11} parent=35 // pred_check_branch
        %196 = sbr.rel (%p194) target = $region40
      $region39: #{_lambda_.11} parent=35 // pred_region
        %p197 = scmp.lt.s32.totalorder %s14, 1
        %s198 = scalar_select %p197, %s14, 1
        %s199 = smul.addr %s198, 2
        %s200 = smul.addr %s199, 8
        %s201 = scalar_lea.vmem %s2, %s200
      $region40: #{_lambda_.11} parent=35 // pred_fallthru
        _
    $region36: #{_lambda_.11} parent=5 // pred_fallthru
      _
  $region6: #{_lambda_.11} parent=0 // loop_footer
    %s12 = sadd.s32 1, %s8
  $region7: #{_lambda_.11} parent=0 // loop_footer_branch
    %7 = sbr.rel target = $region3
  $region8: #{_lambda_.11} parent=0 // loop_exit
    _

// kernel: _lambda_.12
$region0: #{_lambda_.12}
  #allocation0 [shape = 'u32[]', space=smem, size = 0x4, offset = 0x4, fixed_abs, tag = 'smem constant byte address 0x4 - core index']
  #allocation1 [shape = 'u32[144,128]{1,0:T(1,128)}', space=vmem, size = 0x12000, scoped, tag = 'internal scratch']
  %s0 = inlined_call_operand.vmem [shape: f32[32,32], index: 0, kind: input, shape index: {}]
  %s1 = inlined_call_operand.vmem [shape: bf16[32,32], index: 1, kind: input, shape index: {}]
  %s2 = inlined_call_operand.vmem [shape: f32[1,32], index: 2, kind: input, shape index: {}]
  %s3 = inlined_call_operand.vmem [shape: f32[32,32], index: 3, kind: output, shape index: {}]
  %s4 = sld [smem:[#allocation0]]
  $region22: #{_lambda_.12} parent=0
    _
  %s6 = ssub.s32 1, %s4
  %s7 = scalar_select 0, %s6, %s4
  // Predicated region
  $region2: #{_lambda_.12} parent=0 // pred_check
    _
  $region3: #{_lambda_.12} parent=0 // pred_check_branch
    %9 = sbr.rel (0) target = $region5
  $region4: #{_lambda_.12} parent=0 // pred_region
    _
  $region5: #{_lambda_.12} parent=0 // pred_fallthru
    _
  // Predicated region
  $region6: #{_lambda_.12} parent=0 // pred_check
    _
  $region7: #{_lambda_.12} parent=0 // pred_check_branch
    %11 = sbr.rel (0) target = $region9
  $region8: #{_lambda_.12} parent=0 // pred_region
    _
  $region9: #{_lambda_.12} parent=0 // pred_fallthru
    _
  // Predicated region
  $region10: #{_lambda_.12} parent=0 // pred_check
    _
  $region11: #{_lambda_.12} parent=0 // pred_check_branch
    %13 = sbr.rel (0) target = $region13
  $region12: #{_lambda_.12} parent=0 // pred_region
    _
  $region13: #{_lambda_.12} parent=0 // pred_fallthru
    _
  %v15 = vld [vmem:[%s0] sm:$0xff]
  %v16 = vld [vmem:[%s0 + $0x8] sm:$0xff]
  %v17 = vld [vmem:[%s0 + $0x10] sm:$0xff]
  %v18 = vld [vmem:[%s0 + $0x18] sm:$0xff]
  %v19 = vpack.c.bf16 %v16, %v15
  %v20 = vpack.c.bf16 %v18, %v17
  %v21 = vld [vmem:[%s1] sm:$0xf]
  %v22 = vld [vmem:[%s1 + $0x4] sm:$0xf]
  %v23 = vld [vmem:[%s1 + $0x8] sm:$0xf]
  %v24 = vld [vmem:[%s1 + $0xc] sm:$0xf]
  %v25 = vld [vmem:[%s2] sm:$0x1]
  %v27 = vlaneseq
  %v28 = vshrl.u32 %v27, 7
  %v29 = vsub.s32 0, %v28
  %v30 = vrot.slane %v25, %v29
  %v36 = vunpack.c.l.b16 %v21
  %v37 = vunpack.c.l.b16 %v22
  %v38 = vunpack.c.l.b16 %v23
  %v39 = vunpack.c.l.b16 %v24
  %v40 = vpack.c.b16 %v37, %v36
  %v41 = vpack.c.b16 %v39, %v38
  %vm44 = vcmask 261120
  %v46 = vsel %vm44, %v19, 0
  %v49 = vsel %vm44, %v20, 0
  %51 = vmatprep.subr.bf16.mxu0 0
  %52 = vmatpush1.bf16.msra.mxu0 %v40
  %53 = vmatprep.subr.bf16.mxu0 0
  %54 = vmatpush1.bf16.msra.mxu0 %v41
  %55 = vmatprep.subr.bf16.mxu0 0
  %56 = vmatpush1.bf16.msra.mxu0 0
  %57 = vmatprep.subr.bf16.mxu0 0
  %58 = vmatpush1.bf16.msra.mxu0 0
  %59 = vmatprep.subr.bf16.mxu0 0
  %60 = vmatpush1.bf16.msra.mxu0 0
  %61 = vmatprep.subr.bf16.mxu0 0
  %62 = vmatpush1.bf16.msra.mxu0 0
  %63 = vmatprep.subr.bf16.mxu0 0
  %64 = vmatpush1.bf16.msra.mxu0 0
  %65 = vmatprep.subr.bf16.mxu0 0
  %66 = vmatpush1.bf16.msra.mxu0 0
  %67 = vmatprep.subr.bf16.mxu0 0
  %68 = vmatpush1.bf16.msra.mxu0 0
  %69 = vmatprep.subr.bf16.mxu0 0
  %70 = vmatpush1.bf16.msra.mxu0 0
  %71 = vmatprep.subr.bf16.mxu0 0
  %72 = vmatpush1.bf16.msra.mxu0 0
  %73 = vmatprep.subr.bf16.mxu0 0
  %74 = vmatpush1.bf16.msra.mxu0 0
  %75 = vmatprep.subr.bf16.mxu0 0
  %76 = vmatpush1.bf16.msra.mxu0 0
  %77 = vmatprep.subr.bf16.mxu0 0
  %78 = vmatpush1.bf16.msra.mxu0 0
  %79 = vmatprep.subr.bf16.mxu0 0
  %80 = vmatpush1.bf16.msra.mxu0 0
  %81 = vmatprep.subr.bf16.mxu0 0
  %82 = vmatpush1.bf16.msra.mxu0 0
  %83 = vmatprep.mubr.bf16.mxu0 0
  %84 = vmatmul.mubr.bf16.gmra.mrb[0].mxu0 %v46
  %v85 = vpop.f32.mrb[0].mxu0
  %v86 = vadd.f32 %v30, %v85
  %v87 = vpop.f32.mrb[0].mxu0
  %v88 = vpop.f32.mrb[0].mxu0
  %v89 = vadd.f32 %v30, %v88
  %v90 = vpop.f32.mrb[0].mxu0
  %91 = vmatprep.mubr.bf16.mxu0 0
  %92 = vmatmul.mubr.bf16.gmra.mrb[0].mxu0 %v49
  %v93 = vpop.f32.mrb[0].mxu0
  %v94 = vadd.f32 %v30, %v93
  %v95 = vpop.f32.mrb[0].mxu0
  %v96 = vpop.f32.mrb[0].mxu0
  %v97 = vadd.f32 %v30, %v96
  %v98 = vpop.f32.mrb[0].mxu0
  %99 = vdwg.mxu0
  %100 = vst.msk [vmem:[%s3] sm:$0xff] %vm44, %v86
  %101 = vst.msk [vmem:[%s3 + $0x8] sm:$0xff] %vm44, %v89
  %102 = vst.msk [vmem:[%s3 + $0x10] sm:$0xff] %vm44, %v94
  %103 = vst.msk [vmem:[%s3 + $0x18] sm:$0xff] %vm44, %v97
  // Predicated region
  $region14: #{_lambda_.12} parent=0 // pred_check
    _
  $region15: #{_lambda_.12} parent=0 // pred_check_branch
    %105 = sbr.rel (0) target = $region17
  $region16: #{_lambda_.12} parent=0 // pred_region
    _
  $region17: #{_lambda_.12} parent=0 // pred_fallthru
    _
  // Predicated region
  $region18: #{_lambda_.12} parent=0 // pred_check
    _
  $region19: #{_lambda_.12} parent=0 // pred_check_branch
    %107 = sbr.rel (0) target = $region21
  $region20: #{_lambda_.12} parent=0 // pred_region
    _
  $region21: #{_lambda_.12} parent=0 // pred_fallthru
    _

// kernel: _lambda_.13
$region0: #{_lambda_.13}
  #allocation0 [shape = 'u32[]', space=smem, size = 0x4, offset = 0x4, fixed_abs, tag = 'smem constant byte address 0x4 - core index']
  #allocation1 [shape = 'u32[144,128]{1,0:T(1,128)}', space=vmem, size = 0x12000, scoped, tag = 'internal scratch']
  #allocation2 [shape = 'f32[1]{0:T(128)S(6)}', space=smem, size = 0x200, scoped, tag = 'scoped memory for _lambda_.13']
  %s0 = inlined_call_operand.<no memory space> [shape: f32[1], index: 0, kind: input, shape index: {}]
  %s1 = inlined_call_operand.vmem [shape: f32[32,32], index: 1, kind: input, shape index: {}]
  %s2 = inlined_call_operand.vmem [shape: bf16[1,32,64], index: 2, kind: input, shape index: {}]
  %s3 = inlined_call_operand.vmem [shape: f32[1,1,64], index: 3, kind: input, shape index: {}]
  %s4 = inlined_call_operand.vmem [shape: f32[32,32], index: 4, kind: output, shape index: {}]
  %s5 = sld [smem:[#allocation0]]
  $region26: #{_lambda_.13} parent=0
    _
  %s7 = ssub.s32 1, %s5
  %s8 = scalar_select 0, %s7, %s5
  %9 = sst [smem:[#allocation2]] %s0
  // Predicated region
  $region2: #{_lambda_.13} parent=0 // pred_check
    _
  $region3: #{_lambda_.13} parent=0 // pred_check_branch
    %11 = sbr.rel (0) target = $region5
  $region4: #{_lambda_.13} parent=0 // pred_region
    _
  $region5: #{_lambda_.13} parent=0 // pred_fallthru
    _
  // Predicated region
  $region6: #{_lambda_.13} parent=0 // pred_check
    _
  $region7: #{_lambda_.13} parent=0 // pred_check_branch
    %13 = sbr.rel (0) target = $region9
  $region8: #{_lambda_.13} parent=0 // pred_region
    _
  $region9: #{_lambda_.13} parent=0 // pred_fallthru
    _
  // Predicated region
  $region10: #{_lambda_.13} parent=0 // pred_check
    _
  $region11: #{_lambda_.13} parent=0 // pred_check_branch
    %15 = sbr.rel (0) target = $region13
  $region12: #{_lambda_.13} parent=0 // pred_region
    _
  $region13: #{_lambda_.13} parent=0 // pred_fallthru
    _
  // Predicated region
  $region14: #{_lambda_.13} parent=0 // pred_check
    _
  $region15: #{_lambda_.13} parent=0 // pred_check_branch
    %17 = sbr.rel (0) target = $region17
  $region16: #{_lambda_.13} parent=0 // pred_region
    _
  $region17: #{_lambda_.13} parent=0 // pred_fallthru
    _
  %v19 = vld [vmem:[%s1] sm:$0xff]
  %v20 = vld [vmem:[%s1 + $0x8] sm:$0xff]
  %v21 = vld [vmem:[%s1 + $0x10] sm:$0xff]
  %v22 = vld [vmem:[%s1 + $0x18] sm:$0xff]
  %v23 = vpack.c.bf16 %v20, %v19
  %v24 = vpack.c.bf16 %v22, %v21
  %v25 = vld [vmem:[%s2] sm:$0xf]
  %v26 = vld [vmem:[%s2 + $0x4] sm:$0xf]
  %v27 = vld [vmem:[%s2 + $0x8] sm:$0xf]
  %v28 = vld [vmem:[%s2 + $0xc] sm:$0xf]
  %v29 = vld [vmem:[%s3] sm:$0x1]
  %v31 = vlaneseq
  %v32 = vshrl.u32 %v31, 7
  %v33 = vsub.s32 0, %v32
  %v34 = vrot.slane %v29, %v33
  %v40 = vunpack.c.l.b16 %v25
  %v41 = vunpack.c.l.b16 %v26
  %v42 = vunpack.c.l.b16 %v27
  %v43 = vunpack.c.l.b16 %v28
  %v44 = vpack.c.b16 %v41, %v40
  %v45 = vpack.c.b16 %v43, %v42
  %vm48 = vcmask 261120
  %v50 = vsel %vm48, %v23, 0
  %v53 = vsel %vm48, %v24, 0
  %55 = vmatprep.subr.bf16.mxu0 0
  %56 = vmatpush1.bf16.msra.mxu0 %v44
  %57 = vmatprep.subr.bf16.mxu0 0
  %58 = vmatpush1.bf16.msra.mxu0 %v45
  %59 = vmatprep.subr.bf16.mxu0 0
  %60 = vmatpush1.bf16.msra.mxu0 0
  %61 = vmatprep.subr.bf16.mxu0 0
  %62 = vmatpush1.bf16.msra.mxu0 0
  %63 = vmatprep.subr.bf16.mxu0 0
  %64 = vmatpush1.bf16.msra.mxu0 0
  %65 = vmatprep.subr.bf16.mxu0 0
  %66 = vmatpush1.bf16.msra.mxu0 0
  %67 = vmatprep.subr.bf16.mxu0 0
  %68 = vmatpush1.bf16.msra.mxu0 0
  %69 = vmatprep.subr.bf16.mxu0 0
  %70 = vmatpush1.bf16.msra.mxu0 0
  %71 = vmatprep.subr.bf16.mxu0 0
  %72 = vmatpush1.bf16.msra.mxu0 0
  %73 = vmatprep.subr.bf16.mxu0 0
  %74 = vmatpush1.bf16.msra.mxu0 0
  %75 = vmatprep.subr.bf16.mxu0 0
  %76 = vmatpush1.bf16.msra.mxu0 0
  %77 = vmatprep.subr.bf16.mxu0 0
  %78 = vmatpush1.bf16.msra.mxu0 0
  %79 = vmatprep.subr.bf16.mxu0 0
  %80 = vmatpush1.bf16.msra.mxu0 0
  %81 = vmatprep.subr.bf16.mxu0 0
  %82 = vmatpush1.bf16.msra.mxu0 0
  %83 = vmatprep.subr.bf16.mxu0 0
  %84 = vmatpush1.bf16.msra.mxu0 0
  %85 = vmatprep.subr.bf16.mxu0 0
  %86 = vmatpush1.bf16.msra.mxu0 0
  %87 = vmatprep.mubr.bf16.mxu0 0
  %88 = vmatmul.mubr.bf16.gmra.mrb[0].mxu0 %v50
  %v89 = vpop.f32.mrb[0].mxu0
  %v90 = vadd.f32 %v34, %v89
  %v91 = vpop.f32.mrb[0].mxu0
  %v92 = vpop.f32.mrb[0].mxu0
  %v93 = vadd.f32 %v34, %v92
  %v94 = vpop.f32.mrb[0].mxu0
  %95 = vmatprep.mubr.bf16.mxu0 0
  %96 = vmatmul.mubr.bf16.gmra.mrb[0].mxu0 %v53
  %v97 = vpop.f32.mrb[0].mxu0
  %v98 = vadd.f32 %v34, %v97
  %v99 = vpop.f32.mrb[0].mxu0
  %v100 = vpop.f32.mrb[0].mxu0
  %v101 = vadd.f32 %v34, %v100
  %v102 = vpop.f32.mrb[0].mxu0
  %103 = vdwg.mxu0
  %s104 = sld [smem:[#allocation2]]
  %v105 = vstv %s104
  %v106 = vmul.f32 %v105, %v90
  %v107 = vmul.f32 %v105, %v93
  %v108 = vmul.f32 %v105, %v98
  %v109 = vmul.f32 %v105, %v101
  %v110 = vxor.u32 %v106, 2147483648
  %v111 = vxor.u32 %v107, 2147483648
  %v112 = vxor.u32 %v108, 2147483648
  %v113 = vxor.u32 %v109, 2147483648
  %v114 = vmul.f32 %v110, 1.442695
  %v115 = vpow.pop %v114
  %v116 = vmul.f32 %v111, 1.442695
  %v117 = vpow.pop %v116
  %v118 = vmul.f32 %v112, 1.442695
  %v119 = vpow.pop %v118
  %v120 = vmul.f32 %v113, 1.442695
  %v121 = vpow.pop %v120
  %v122 = vadd.f32 %v115, 1.0
  %v123 = vadd.f32 %v117, 1.0
  %v124 = vadd.f32 %v119, 1.0
  %v125 = vadd.f32 %v121, 1.0
  %v126 = vrcp.pop %v122
  %v127 = vmul.f32 1.0, %v126
  %v128 = vrcp.pop %v123
  %v129 = vmul.f32 1.0, %v128
  %v130 = vrcp.pop %v124
  %v131 = vmul.f32 1.0, %v130
  %v132 = vrcp.pop %v125
  %v133 = vmul.f32 1.0, %v132
  %v134 = vmul.f32 %v90, %v127
  %v135 = vmul.f32 %v93, %v129
  %v136 = vmul.f32 %v98, %v131
  %v137 = vmul.f32 %v101, %v133
  %142 = vrot.lane.b32.xlu0 %v90, 96
  %v143 = vpop.permute.xlu0 %142
  %144 = vrot.lane.b32.xlu0 %v93, 96
  %v145 = vpop.permute.xlu0 %144
  %146 = vrot.lane.b32.xlu0 %v98, 96
  %v147 = vpop.permute.xlu0 %146
  %148 = vrot.lane.b32.xlu0 %v101, 96
  %v149 = vpop.permute.xlu0 %148
  %v154 = vmul.f32 %v134, %v143
  %v155 = vmul.f32 %v135, %v145
  %v156 = vmul.f32 %v136, %v147
  %v157 = vmul.f32 %v137, %v149
  %158 = vst.msk [vmem:[%s4] sm:$0xff] %vm48, %v154
  %159 = vst.msk [vmem:[%s4 + $0x8] sm:$0xff] %vm48, %v155
  %160 = vst.msk [vmem:[%s4 + $0x10] sm:$0xff] %vm48, %v156
  %161 = vst.msk [vmem:[%s4 + $0x18] sm:$0xff] %vm48, %v157
  // Predicated region
  $region18: #{_lambda_.13} parent=0 // pred_check
    _
  $region19: #{_lambda_.13} parent=0 // pred_check_branch
    %163 = sbr.rel (0) target = $region21
  $region20: #{_lambda_.13} parent=0 // pred_region
    _
  $region21: #{_lambda_.13} parent=0 // pred_fallthru
    _
  // Predicated region
  $region22: #{_lambda_.13} parent=0 // pred_check
    _
  $region23: #{_lambda_.13} parent=0 // pred_check_branch
    %165 = sbr.rel (0) target = $region25
  $region24: #{_lambda_.13} parent=0 // pred_region
    _
  $region25: #{_lambda_.13} parent=0 // pred_fallthru
    _

</llo_original>
